<compile_context>
chip_gen: v6e
topology: v6e:2x2x1
jax: 0.10.0
libtpu: 0.0.40
codegen_flags: <defaults>
</compile_context>

<pallas_src>
import functools

import numpy as np

import jax
import jax.numpy as jnp
from jax.experimental import pallas as pl
from jax.experimental.pallas import tpu as pltpu

_BN_EPS = 1e-5


# ---------------------------------------------------------------------------
# In-kernel helpers (traced into the single fused kernel)
# ---------------------------------------------------------------------------
def _fixed_round(x, integer_bits=16, fraction_bits=16):
    """DeepShift ste.round_fixed_point forward (floor to 2^-frac grid, clamp)."""
    scale = 2.0 ** fraction_bits
    bound = 2.0 ** (integer_bits - 1)
    r = jnp.floor(x * scale) * (1.0 / scale)
    return jnp.clip(r, -bound, bound - 1.0)


def _depthwise_same_roll(a, dw_rows, masks, k, pad, h, w):
    """Depthwise KxK "same" shift-conv on a lane-dense (R, H*W) block.

    Per tap: one XLU lane rotation (pltpu.roll) + one full-width masked VPU FMA.
    masks is a (K*K, H*W) 0/1 block precomputed at trace time (it also provides
    the zero padding); dw_rows is (R, K*K) with one tap column per (image, chan).
    """
    m = h * w
    acc = None
    for dy in range(k):
        for dx in range(k):
            t = dy * k + dx
            off = (dy - pad) * w + (dx - pad)          # out[q] reads a[q + off]
            # pltpu.roll == jnp.roll: rolled[q] = a[(q - shift) % m]
            rolled = a if off == 0 else pltpu.roll(a, shift=(-off) % m, axis=1)
            tap = rolled * masks[t:t + 1, :] * dw_rows[:, t:t + 1]
            acc = tap if acc is None else acc + tap
    return acc


def _depthwise_general(a, dw_rows, k, stride, pad, h, w):
    # TODO(synk): lane-sparse fallback for stride>1 / non-"same" padding; only
    # traced for those configs (the __main__ config uses the roll fast path).
    rows_total = a.shape[0]
    h_pad, w_pad = h + 2 * pad, w + 2 * pad
    h_out = (h_pad - k) // stride + 1
    w_out = (w_pad - k) // stride + 1
    out_rows = []
    for r in range(rows_total):
        xc = jnp.concatenate(
            [a[r:r + 1, i * w:(i + 1) * w] for i in range(h)], axis=0)   # (h, w)
        if pad:
            zc = jnp.zeros((h, pad), jnp.float32)
            xc = jnp.concatenate([zc, xc, zc], axis=1)
            zr = jnp.zeros((pad, w_pad), jnp.float32)
            xc = jnp.concatenate([zr, xc, zr], axis=0)
        acc = jnp.zeros((h_out, w_out), jnp.float32)
        for dy in range(k):
            for dx in range(k):
                win = jax.lax.slice(
                    xc, (dy, dx),
                    (dy + (h_out - 1) * stride + 1, dx + (w_out - 1) * stride + 1),
                    (stride, stride))
                t = dy * k + dx
                acc = acc + dw_rows[r:r + 1, t:t + 1] * win
        out_rows.append(
            jnp.concatenate([acc[i:i + 1, :] for i in range(h_out)], axis=1))
    return jnp.concatenate(out_rows, axis=0), h_out, w_out


def _stage_compute(x, dw_rows, pw, masks, n, c_in, c_out, k, stride, pad, h, w):
    """ReLU -> quant -> depthwise KxK -> quant -> pointwise 1x1 (shift weights).

    x: (n*c_in, h*w) lane-dense block.  Returns (n*c_out, h_out*w_out).
    """
    a = _fixed_round(jnp.maximum(x, 0.0))         # nn.ReLU + Conv2dShift input quant
    if stride == 1 and 2 * pad == k - 1:          # "same" shape -> roll fast path
        dwo = _depthwise_same_roll(a, dw_rows, masks, k, pad, h, w)
    else:
        dwo, _, _ = _depthwise_general(a, dw_rows, k, stride, pad, h, w)
    dwq = _fixed_round(dwo)                       # quant for the 1x1 Conv2dShift
    # pointwise 1x1: per image, c_in FMAs on full (c_out, m) blocks (VPU path;
    # the MXU would run at ~1-3% utilization at these channel counts).
    imgs = []
    for img in range(n):
        blk = dwq[img * c_in:(img + 1) * c_in, :]
        acc = blk[0:1, :] * pw[:, 0:1]
        for ci in range(1, c_in):
            acc = acc + blk[ci:ci + 1, :] * pw[:, ci:ci + 1]
        imgs.append(acc)
    return imgs[0] if n == 1 else jnp.concatenate(imgs, axis=0)


def _batchnorm_rows(y, gamma, beta, n, c, m):
    """Training-mode BatchNorm2d (batch statistics, biased variance) on a
    (n*c, m) lane-dense block; stats reduced fully in-register (no HBM)."""
    row_sum = jnp.sum(y, axis=1, keepdims=True)            # (n*c, 1)
    row_ssq = jnp.sum(y * y, axis=1, keepdims=True)
    ch_sum, ch_ssq = row_sum[0:c, :], row_ssq[0:c, :]
    for img in range(1, n):
        ch_sum = ch_sum + row_sum[img * c:(img + 1) * c, :]
        ch_ssq = ch_ssq + row_ssq[img * c:(img + 1) * c, :]
    inv_cnt = 1.0 / float(n * m)
    mean = ch_sum * inv_cnt
    var = jnp.maximum(ch_ssq * inv_cnt - mean * mean, 0.0)  # biased batch variance
    scale = gamma * jax.lax.rsqrt(var + _BN_EPS)            # (c, 1)
    shift = beta - mean * scale
    if n > 1:
        scale = jnp.concatenate([scale] * n, axis=0)        # tile over images
        shift = jnp.concatenate([shift] * n, axis=0)
    return y * scale + shift


# ---------------------------------------------------------------------------
# Fused SepConv kernel (single invocation, everything VMEM-resident)
# ---------------------------------------------------------------------------
def _make_sepconv_kernel(n, c_in, c_out, k, stride, pad, h, w):
    h1 = (h + 2 * pad - k) // stride + 1
    w1 = (w + 2 * pad - k) // stride + 1
    h2 = h1 + 2 * pad - k + 1
    w2 = w1 + 2 * pad - k + 1

    def kernel(x_ref, dw1_ref, pw1_ref, m1_ref, dw2_ref, pw2_ref, m2_ref,
               g1_ref, b1_ref, g2_ref, b2_ref, o_ref):
        # stage 1: ReLU -> dw1 (k, stride, pad, groups=C_in) -> pw1 (C_in->C_in)
        y1 = _stage_compute(x_ref[...], dw1_ref[...], pw1_ref[...], m1_ref[...],
                            n, c_in, c_in, k, stride, pad, h, w)
        # BatchNorm2d(C_in): stats + affine, fused (never leaves VMEM)
        y1 = _batchnorm_rows(y1, g1_ref[...], b1_ref[...], n, c_in, h1 * w1)
        # stage 2: ReLU -> dw2 (k, stride 1, pad) -> pw2 (C_in->C_out)
        y2 = _stage_compute(y1, dw2_ref[...], pw2_ref[...], m2_ref[...],
                            n, c_in, c_out, k, 1, pad, h1, w1)
        # BatchNorm2d(C_out) + the only HBM write of the whole SepConv
        o_ref[...] = _batchnorm_rows(y2, g2_ref[...], b2_ref[...], n, c_out, h2 * w2)

    return kernel, h2, w2


def _tap_masks(h, w, k, pad):
    """0/1 boundary masks (one (1, H*W) row per tap) for the roll-based depthwise.
    Computed with numpy at trace time (shapes are static)."""
    q = np.arange(h * w)
    r, c = q // w, q % w
    masks = np.zeros((k * k, h * w), np.float32)
    for dy in range(k):
        for dx in range(k):
            rr, cc = r + dy - pad, c + dx - pad
            masks[dy * k + dx] = (rr >= 0) & (rr < h) & (cc >= 0) & (cc < w)
    return masks


# ---------------------------------------------------------------------------
# Parameter construction / one-time weight preparation (plain JAX glue)
# ---------------------------------------------------------------------------
def shift_to_weight(shift, sign, weight_bits=5):
    """Conv2dShift effective weight: sign(round(sign)) * 2^round(clamp(shift))."""
    lo = -(2 ** (weight_bits - 1) - 2)          # -14 for weight_bits=5
    shift_r = jnp.round(jnp.clip(shift, lo, 0.0))
    sign_r = jnp.sign(jnp.round(sign))
    return (2.0 ** shift_r) * sign_r


def init_sepconv_params(key, c_in, c_out, k):
    ks = jax.random.split(key, 8)
    u = functools.partial(jax.random.uniform, dtype=jnp.float32)
    return {
        "dw1_shift": u(ks[0], (c_in, 1, k, k), minval=-10.0, maxval=-1.0),
        "dw1_sign":  u(ks[1], (c_in, 1, k, k), minval=-1.0, maxval=1.0),
        "pw1_shift": u(ks[2], (c_in, c_in, 1, 1), minval=-10.0, maxval=-1.0),
        "pw1_sign":  u(ks[3], (c_in, c_in, 1, 1), minval=-1.0, maxval=1.0),
        "dw2_shift": u(ks[4], (c_in, 1, k, k), minval=-10.0, maxval=-1.0),
        "dw2_sign":  u(ks[5], (c_in, 1, k, k), minval=-1.0, maxval=1.0),
        "pw2_shift": u(ks[6], (c_out, c_in, 1, 1), minval=-10.0, maxval=-1.0),
        "pw2_sign":  u(ks[7], (c_out, c_in, 1, 1), minval=-1.0, maxval=1.0),
        # BatchNorm2d(affine=True) default init: weight=1, bias=0
        "bn1_gamma": jnp.ones((c_in,), jnp.float32),
        "bn1_beta":  jnp.zeros((c_in,), jnp.float32),
        "bn2_gamma": jnp.ones((c_out,), jnp.float32),
        "bn2_beta":  jnp.zeros((c_out,), jnp.float32),
    }


def prepare_params(params):
    """One-time shift/sign -> effective-weight transform in kernel-ready layout."""
    c_in = params["dw1_shift"].shape[0]
    c_out = params["pw2_shift"].shape[0]
    k = params["dw1_shift"].shape[-1]
    return {
        # depthwise taps: (C_in, K*K), tap index = dy*K + dx
        "dw1": shift_to_weight(params["dw1_shift"], params["dw1_sign"]).reshape(c_in, k * k),
        "dw2": shift_to_weight(params["dw2_shift"], params["dw2_sign"]).reshape(c_in, k * k),
        # pointwise weights kept in PyTorch (C_out, C_in) layout -> column ci slices
        "pw1": shift_to_weight(params["pw1_shift"], params["pw1_sign"])[:, :, 0, 0],
        "pw2": shift_to_weight(params["pw2_shift"], params["pw2_sign"])[:, :, 0, 0],
        "bn1_gamma": params["bn1_gamma"].reshape(c_in, 1),
        "bn1_beta":  params["bn1_beta"].reshape(c_in, 1),
        "bn2_gamma": params["bn2_gamma"].reshape(c_out, 1),
        "bn2_beta":  params["bn2_beta"].reshape(c_out, 1),
    }


# ---------------------------------------------------------------------------
# SepConv forward
# ---------------------------------------------------------------------------
@functools.partial(jax.jit, static_argnames=("kernel_size", "stride", "padding"))
def sep_conv_forward(x_nchw, prep, *, kernel_size, stride, padding):
    k, s, p = kernel_size, stride, padding
    n, c_in, h, w = x_nchw.shape
    c_out = prep["pw2"].shape[0]
    h1 = (h + 2 * p - k) // s + 1
    w1 = (w + 2 * p - k) // s + 1
    kernel, h2, w2 = _make_sepconv_kernel(n, c_in, c_out, k, s, p, h, w)

    # lane-dense layout: rows = (image, channel), lanes = H*W (free reshape)
    x2d = x_nchw.reshape(n * c_in, h * w).astype(jnp.float32)
    # depthwise taps tiled per (image, channel) row -> one (R, 1) column per tap
    dw1_rows = jnp.tile(prep["dw1"], (n, 1))
    dw2_rows = jnp.tile(prep["dw2"], (n, 1))
    m1 = jnp.asarray(_tap_masks(h, w, k, p))       # trace-time constants
    m2 = jnp.asarray(_tap_masks(h1, w1, k, p))

    # Whole SepConv in ONE grid-less pallas_call: the (N*C, H*W) activations
    # (a few KB here) stay VMEM-resident end to end; intermediates, BN batch
    # statistics and both affine applies never touch HBM.
    # TODO(synk): for large N*H*W, grid over N / H-tiles with a two-pass BN
    # (and split images across the two v7x TensorCores) instead of one block.
    out2d = pl.pallas_call(
        kernel,
        out_shape=jax.ShapeDtypeStruct((n * c_out, h2 * w2), jnp.float32),
    )(x2d, dw1_rows, prep["pw1"], m1, dw2_rows, prep["pw2"], m2,
      prep["bn1_gamma"], prep["bn1_beta"], prep["bn2_gamma"], prep["bn2_beta"])
    return out2d.reshape(n, c_out, h2, w2)


# ---------------------------------------------------------------------------
if __name__ == "__main__":
    C_IN, C_OUT = 4, 8
    KERNEL, STRIDE, PAD = 3, 1, 1
    N, H, W = 2, 16, 16

    key = jax.random.PRNGKey(0)
    k_param, k_x = jax.random.split(key)
    params = init_sepconv_params(k_param, C_IN, C_OUT, KERNEL)
    prep = prepare_params(params)                 # hoisted: runs once, not per call
    x = jax.random.normal(k_x, (N, C_IN, H, W), dtype=jnp.float32)

    out = sep_conv_forward(x, prep, kernel_size=KERNEL, stride=STRIDE, padding=PAD)
    out = jax.block_until_ready(out)

    h1 = (H + 2 * PAD - KERNEL) // STRIDE + 1
    h2 = h1 + 2 * PAD - KERNEL + 1
    assert out.shape == (N, C_OUT, h2, h2), out.shape
    assert bool(jnp.all(jnp.isfinite(out)))
    print("KERNEL_OK")
</pallas_src>

<mosaic_0001>
module attributes {stable_mosaic.version = 11 : i64} {
  func.func @kernel(%arg0: memref<8x256xf32, #tpu.memory_space<vmem>>, %arg1: memref<8x9xf32, #tpu.memory_space<vmem>>, %arg2: memref<4x4xf32, #tpu.memory_space<vmem>>, %arg3: memref<9x256xf32, #tpu.memory_space<vmem>>, %arg4: memref<8x9xf32, #tpu.memory_space<vmem>>, %arg5: memref<8x4xf32, #tpu.memory_space<vmem>>, %arg6: memref<9x256xf32, #tpu.memory_space<vmem>>, %arg7: memref<4x1xf32, #tpu.memory_space<vmem>>, %arg8: memref<4x1xf32, #tpu.memory_space<vmem>>, %arg9: memref<8x1xf32, #tpu.memory_space<vmem>>, %arg10: memref<8x1xf32, #tpu.memory_space<vmem>>, %arg11: memref<16x256xf32, #tpu.memory_space<vmem>>) attributes {dimension_semantics = [], scalar_prefetch = 0 : i64, scratch_operands = 0 : i64, tpu.core_type = #tpu.core_type<tc>} {
    %c0 = arith.constant 0 : index
    %c0_0 = arith.constant 0 : index
    %0 = vector.load %arg0[%c0, %c0_0] : memref<8x256xf32, #tpu.memory_space<vmem>>, vector<8x256xf32>
    %c0_1 = arith.constant 0 : index
    %c0_2 = arith.constant 0 : index
    %1 = vector.load %arg1[%c0_1, %c0_2] : memref<8x9xf32, #tpu.memory_space<vmem>>, vector<8x9xf32>
    %c0_3 = arith.constant 0 : index
    %c0_4 = arith.constant 0 : index
    %2 = vector.load %arg2[%c0_3, %c0_4] : memref<4x4xf32, #tpu.memory_space<vmem>>, vector<4x4xf32>
    %c0_5 = arith.constant 0 : index
    %c0_6 = arith.constant 0 : index
    %3 = vector.load %arg3[%c0_5, %c0_6] : memref<9x256xf32, #tpu.memory_space<vmem>>, vector<9x256xf32>
    %cst = arith.constant 0.000000e+00 : f32
    %4 = vector.broadcast %cst : f32 to vector<8x256xf32>
    %5 = arith.maximumf %0, %4 : vector<8x256xf32>
    %cst_7 = arith.constant 6.553600e+04 : f32
    %6 = vector.broadcast %cst_7 : f32 to vector<8x256xf32>
    %7 = arith.mulf %5, %6 : vector<8x256xf32>
    %8 = math.floor %7 : vector<8x256xf32>
    %cst_8 = arith.constant 1.52587891E-5 : f32
    %9 = vector.broadcast %cst_8 : f32 to vector<8x256xf32>
    %10 = arith.mulf %8, %9 : vector<8x256xf32>
    %cst_9 = arith.constant -3.276800e+04 : f32
    %cst_10 = arith.constant 3.276700e+04 : f32
    %11 = vector.broadcast %cst_9 : f32 to vector<8x256xf32>
    %12 = arith.maximumf %11, %10 : vector<8x256xf32>
    %13 = vector.broadcast %cst_10 : f32 to vector<8x256xf32>
    %14 = arith.minimumf %13, %12 : vector<8x256xf32>
    %c17_i32 = arith.constant 17 : i32
    %15 = tpu.dynamic_rotate %14 by %c17_i32 dim 1 : vector<8x256xf32>, i32 -> vector<8x256xf32>
    %16 = vector.extract_strided_slice %3 {offsets = [0, 0], sizes = [1, 256], strides = [1, 1]} : vector<9x256xf32> to vector<1x256xf32>
    %17 = vector.broadcast %16 : vector<1x256xf32> to vector<8x256xf32>
    %18 = arith.mulf %15, %17 : vector<8x256xf32>
    %19 = vector.extract_strided_slice %1 {offsets = [0, 0], sizes = [8, 1], strides = [1, 1]} : vector<8x9xf32> to vector<8x1xf32>
    %20 = vector.broadcast %19 : vector<8x1xf32> to vector<8x256xf32>
    %21 = arith.mulf %18, %20 : vector<8x256xf32>
    %c16_i32 = arith.constant 16 : i32
    %22 = tpu.dynamic_rotate %14 by %c16_i32 dim 1 : vector<8x256xf32>, i32 -> vector<8x256xf32>
    %23 = vector.extract_strided_slice %3 {offsets = [1, 0], sizes = [1, 256], strides = [1, 1]} : vector<9x256xf32> to vector<1x256xf32>
    %24 = vector.broadcast %23 : vector<1x256xf32> to vector<8x256xf32>
    %25 = arith.mulf %22, %24 : vector<8x256xf32>
    %26 = vector.extract_strided_slice %1 {offsets = [0, 1], sizes = [8, 1], strides = [1, 1]} : vector<8x9xf32> to vector<8x1xf32>
    %27 = vector.broadcast %26 : vector<8x1xf32> to vector<8x256xf32>
    %28 = arith.mulf %25, %27 : vector<8x256xf32>
    %29 = arith.addf %21, %28 : vector<8x256xf32>
    %c15_i32 = arith.constant 15 : i32
    %30 = tpu.dynamic_rotate %14 by %c15_i32 dim 1 : vector<8x256xf32>, i32 -> vector<8x256xf32>
    %31 = vector.extract_strided_slice %3 {offsets = [2, 0], sizes = [1, 256], strides = [1, 1]} : vector<9x256xf32> to vector<1x256xf32>
    %32 = vector.broadcast %31 : vector<1x256xf32> to vector<8x256xf32>
    %33 = arith.mulf %30, %32 : vector<8x256xf32>
    %34 = vector.extract_strided_slice %1 {offsets = [0, 2], sizes = [8, 1], strides = [1, 1]} : vector<8x9xf32> to vector<8x1xf32>
    %35 = vector.broadcast %34 : vector<8x1xf32> to vector<8x256xf32>
    %36 = arith.mulf %33, %35 : vector<8x256xf32>
    %37 = arith.addf %29, %36 : vector<8x256xf32>
    %c1_i32 = arith.constant 1 : i32
    %38 = tpu.dynamic_rotate %14 by %c1_i32 dim 1 : vector<8x256xf32>, i32 -> vector<8x256xf32>
    %39 = vector.extract_strided_slice %3 {offsets = [3, 0], sizes = [1, 256], strides = [1, 1]} : vector<9x256xf32> to vector<1x256xf32>
    %40 = vector.broadcast %39 : vector<1x256xf32> to vector<8x256xf32>
    %41 = arith.mulf %38, %40 : vector<8x256xf32>
    %42 = vector.extract_strided_slice %1 {offsets = [0, 3], sizes = [8, 1], strides = [1, 1]} : vector<8x9xf32> to vector<8x1xf32>
    %43 = vector.broadcast %42 : vector<8x1xf32> to vector<8x256xf32>
    %44 = arith.mulf %41, %43 : vector<8x256xf32>
    %45 = arith.addf %37, %44 : vector<8x256xf32>
    %46 = vector.extract_strided_slice %3 {offsets = [4, 0], sizes = [1, 256], strides = [1, 1]} : vector<9x256xf32> to vector<1x256xf32>
    %47 = vector.broadcast %46 : vector<1x256xf32> to vector<8x256xf32>
    %48 = arith.mulf %14, %47 : vector<8x256xf32>
    %49 = vector.extract_strided_slice %1 {offsets = [0, 4], sizes = [8, 1], strides = [1, 1]} : vector<8x9xf32> to vector<8x1xf32>
    %50 = vector.broadcast %49 : vector<8x1xf32> to vector<8x256xf32>
    %51 = arith.mulf %48, %50 : vector<8x256xf32>
    %52 = arith.addf %45, %51 : vector<8x256xf32>
    %c255_i32 = arith.constant 255 : i32
    %53 = tpu.dynamic_rotate %14 by %c255_i32 dim 1 : vector<8x256xf32>, i32 -> vector<8x256xf32>
    %54 = vector.extract_strided_slice %3 {offsets = [5, 0], sizes = [1, 256], strides = [1, 1]} : vector<9x256xf32> to vector<1x256xf32>
    %55 = vector.broadcast %54 : vector<1x256xf32> to vector<8x256xf32>
    %56 = arith.mulf %53, %55 : vector<8x256xf32>
    %57 = vector.extract_strided_slice %1 {offsets = [0, 5], sizes = [8, 1], strides = [1, 1]} : vector<8x9xf32> to vector<8x1xf32>
    %58 = vector.broadcast %57 : vector<8x1xf32> to vector<8x256xf32>
    %59 = arith.mulf %56, %58 : vector<8x256xf32>
    %60 = arith.addf %52, %59 : vector<8x256xf32>
    %c241_i32 = arith.constant 241 : i32
    %61 = tpu.dynamic_rotate %14 by %c241_i32 dim 1 : vector<8x256xf32>, i32 -> vector<8x256xf32>
    %62 = vector.extract_strided_slice %3 {offsets = [6, 0], sizes = [1, 256], strides = [1, 1]} : vector<9x256xf32> to vector<1x256xf32>
    %63 = vector.broadcast %62 : vector<1x256xf32> to vector<8x256xf32>
    %64 = arith.mulf %61, %63 : vector<8x256xf32>
    %65 = vector.extract_strided_slice %1 {offsets = [0, 6], sizes = [8, 1], strides = [1, 1]} : vector<8x9xf32> to vector<8x1xf32>
    %66 = vector.broadcast %65 : vector<8x1xf32> to vector<8x256xf32>
    %67 = arith.mulf %64, %66 : vector<8x256xf32>
    %68 = arith.addf %60, %67 : vector<8x256xf32>
    %c240_i32 = arith.constant 240 : i32
    %69 = tpu.dynamic_rotate %14 by %c240_i32 dim 1 : vector<8x256xf32>, i32 -> vector<8x256xf32>
    %70 = vector.extract_strided_slice %3 {offsets = [7, 0], sizes = [1, 256], strides = [1, 1]} : vector<9x256xf32> to vector<1x256xf32>
    %71 = vector.broadcast %70 : vector<1x256xf32> to vector<8x256xf32>
    %72 = arith.mulf %69, %71 : vector<8x256xf32>
    %73 = vector.extract_strided_slice %1 {offsets = [0, 7], sizes = [8, 1], strides = [1, 1]} : vector<8x9xf32> to vector<8x1xf32>
    %74 = vector.broadcast %73 : vector<8x1xf32> to vector<8x256xf32>
    %75 = arith.mulf %72, %74 : vector<8x256xf32>
    %76 = arith.addf %68, %75 : vector<8x256xf32>
    %c239_i32 = arith.constant 239 : i32
    %77 = tpu.dynamic_rotate %14 by %c239_i32 dim 1 : vector<8x256xf32>, i32 -> vector<8x256xf32>
    %78 = vector.extract_strided_slice %3 {offsets = [8, 0], sizes = [1, 256], strides = [1, 1]} : vector<9x256xf32> to vector<1x256xf32>
    %79 = vector.broadcast %78 : vector<1x256xf32> to vector<8x256xf32>
    %80 = arith.mulf %77, %79 : vector<8x256xf32>
    %81 = vector.extract_strided_slice %1 {offsets = [0, 8], sizes = [8, 1], strides = [1, 1]} : vector<8x9xf32> to vector<8x1xf32>
    %82 = vector.broadcast %81 : vector<8x1xf32> to vector<8x256xf32>
    %83 = arith.mulf %80, %82 : vector<8x256xf32>
    %84 = arith.addf %76, %83 : vector<8x256xf32>
    %cst_11 = arith.constant 6.553600e+04 : f32
    %85 = vector.broadcast %cst_11 : f32 to vector<8x256xf32>
    %86 = arith.mulf %84, %85 : vector<8x256xf32>
    %87 = math.floor %86 : vector<8x256xf32>
    %cst_12 = arith.constant 1.52587891E-5 : f32
    %88 = vector.broadcast %cst_12 : f32 to vector<8x256xf32>
    %89 = arith.mulf %87, %88 : vector<8x256xf32>
    %cst_13 = arith.constant -3.276800e+04 : f32
    %cst_14 = arith.constant 3.276700e+04 : f32
    %90 = vector.broadcast %cst_13 : f32 to vector<8x256xf32>
    %91 = arith.maximumf %90, %89 : vector<8x256xf32>
    %92 = vector.broadcast %cst_14 : f32 to vector<8x256xf32>
    %93 = arith.minimumf %92, %91 : vector<8x256xf32>
    %94 = vector.extract_strided_slice %93 {offsets = [0, 0], sizes = [4, 256], strides = [1, 1]} : vector<8x256xf32> to vector<4x256xf32>
    %95 = vector.extract_strided_slice %94 {offsets = [0, 0], sizes = [1, 256], strides = [1, 1]} : vector<4x256xf32> to vector<1x256xf32>
    %96 = vector.extract_strided_slice %2 {offsets = [0, 0], sizes = [4, 1], strides = [1, 1]} : vector<4x4xf32> to vector<4x1xf32>
    %97 = vector.broadcast %95 : vector<1x256xf32> to vector<4x256xf32>
    %98 = vector.broadcast %96 : vector<4x1xf32> to vector<4x256xf32>
    %99 = arith.mulf %97, %98 : vector<4x256xf32>
    %100 = vector.extract_strided_slice %94 {offsets = [1, 0], sizes = [1, 256], strides = [1, 1]} : vector<4x256xf32> to vector<1x256xf32>
    %101 = vector.extract_strided_slice %2 {offsets = [0, 1], sizes = [4, 1], strides = [1, 1]} : vector<4x4xf32> to vector<4x1xf32>
    %102 = vector.broadcast %100 : vector<1x256xf32> to vector<4x256xf32>
    %103 = vector.broadcast %101 : vector<4x1xf32> to vector<4x256xf32>
    %104 = arith.mulf %102, %103 : vector<4x256xf32>
    %105 = arith.addf %99, %104 : vector<4x256xf32>
    %106 = vector.extract_strided_slice %94 {offsets = [2, 0], sizes = [1, 256], strides = [1, 1]} : vector<4x256xf32> to vector<1x256xf32>
    %107 = vector.extract_strided_slice %2 {offsets = [0, 2], sizes = [4, 1], strides = [1, 1]} : vector<4x4xf32> to vector<4x1xf32>
    %108 = vector.broadcast %106 : vector<1x256xf32> to vector<4x256xf32>
    %109 = vector.broadcast %107 : vector<4x1xf32> to vector<4x256xf32>
    %110 = arith.mulf %108, %109 : vector<4x256xf32>
    %111 = arith.addf %105, %110 : vector<4x256xf32>
    %112 = vector.extract_strided_slice %94 {offsets = [3, 0], sizes = [1, 256], strides = [1, 1]} : vector<4x256xf32> to vector<1x256xf32>
    %113 = vector.extract_strided_slice %2 {offsets = [0, 3], sizes = [4, 1], strides = [1, 1]} : vector<4x4xf32> to vector<4x1xf32>
    %114 = vector.broadcast %112 : vector<1x256xf32> to vector<4x256xf32>
    %115 = vector.broadcast %113 : vector<4x1xf32> to vector<4x256xf32>
    %116 = arith.mulf %114, %115 : vector<4x256xf32>
    %117 = arith.addf %111, %116 : vector<4x256xf32>
    %118 = vector.extract_strided_slice %93 {offsets = [4, 0], sizes = [4, 256], strides = [1, 1]} : vector<8x256xf32> to vector<4x256xf32>
    %119 = vector.extract_strided_slice %118 {offsets = [0, 0], sizes = [1, 256], strides = [1, 1]} : vector<4x256xf32> to vector<1x256xf32>
    %120 = vector.extract_strided_slice %2 {offsets = [0, 0], sizes = [4, 1], strides = [1, 1]} : vector<4x4xf32> to vector<4x1xf32>
    %121 = vector.broadcast %119 : vector<1x256xf32> to vector<4x256xf32>
    %122 = vector.broadcast %120 : vector<4x1xf32> to vector<4x256xf32>
    %123 = arith.mulf %121, %122 : vector<4x256xf32>
    %124 = vector.extract_strided_slice %118 {offsets = [1, 0], sizes = [1, 256], strides = [1, 1]} : vector<4x256xf32> to vector<1x256xf32>
    %125 = vector.extract_strided_slice %2 {offsets = [0, 1], sizes = [4, 1], strides = [1, 1]} : vector<4x4xf32> to vector<4x1xf32>
    %126 = vector.broadcast %124 : vector<1x256xf32> to vector<4x256xf32>
    %127 = vector.broadcast %125 : vector<4x1xf32> to vector<4x256xf32>
    %128 = arith.mulf %126, %127 : vector<4x256xf32>
    %129 = arith.addf %123, %128 : vector<4x256xf32>
    %130 = vector.extract_strided_slice %118 {offsets = [2, 0], sizes = [1, 256], strides = [1, 1]} : vector<4x256xf32> to vector<1x256xf32>
    %131 = vector.extract_strided_slice %2 {offsets = [0, 2], sizes = [4, 1], strides = [1, 1]} : vector<4x4xf32> to vector<4x1xf32>
    %132 = vector.broadcast %130 : vector<1x256xf32> to vector<4x256xf32>
    %133 = vector.broadcast %131 : vector<4x1xf32> to vector<4x256xf32>
    %134 = arith.mulf %132, %133 : vector<4x256xf32>
    %135 = arith.addf %129, %134 : vector<4x256xf32>
    %136 = vector.extract_strided_slice %118 {offsets = [3, 0], sizes = [1, 256], strides = [1, 1]} : vector<4x256xf32> to vector<1x256xf32>
    %137 = vector.extract_strided_slice %2 {offsets = [0, 3], sizes = [4, 1], strides = [1, 1]} : vector<4x4xf32> to vector<4x1xf32>
    %138 = vector.broadcast %136 : vector<1x256xf32> to vector<4x256xf32>
    %139 = vector.broadcast %137 : vector<4x1xf32> to vector<4x256xf32>
    %140 = arith.mulf %138, %139 : vector<4x256xf32>
    %141 = arith.addf %135, %140 : vector<4x256xf32>
    %142 = tpu.concatenate %117, %141 in 0 : vector<4x256xf32>, vector<4x256xf32> -> vector<8x256xf32>
    %c0_15 = arith.constant 0 : index
    %c0_16 = arith.constant 0 : index
    %143 = vector.load %arg7[%c0_15, %c0_16] : memref<4x1xf32, #tpu.memory_space<vmem>>, vector<4x1xf32>
    %c0_17 = arith.constant 0 : index
    %c0_18 = arith.constant 0 : index
    %144 = vector.load %arg8[%c0_17, %c0_18] : memref<4x1xf32, #tpu.memory_space<vmem>>, vector<4x1xf32>
    %cst_19 = arith.constant dense<0.000000e+00> : vector<8xf32>
    %145 = vector.multi_reduction <add>, %142, %cst_19 [1] : vector<8x256xf32> to vector<8xf32>
    %146 = vector.shape_cast %145 : vector<8xf32> to vector<8x1xf32>
    %147 = arith.mulf %142, %142 : vector<8x256xf32>
    %cst_20 = arith.constant dense<0.000000e+00> : vector<8xf32>
    %148 = vector.multi_reduction <add>, %147, %cst_20 [1] : vector<8x256xf32> to vector<8xf32>
    %149 = vector.shape_cast %148 : vector<8xf32> to vector<8x1xf32>
    %150 = vector.extract_strided_slice %146 {offsets = [0, 0], sizes = [4, 1], strides = [1, 1]} : vector<8x1xf32> to vector<4x1xf32>
    %151 = vector.extract_strided_slice %149 {offsets = [0, 0], sizes = [4, 1], strides = [1, 1]} : vector<8x1xf32> to vector<4x1xf32>
    %152 = vector.extract_strided_slice %146 {offsets = [4, 0], sizes = [4, 1], strides = [1, 1]} : vector<8x1xf32> to vector<4x1xf32>
    %153 = arith.addf %150, %152 : vector<4x1xf32>
    %154 = vector.extract_strided_slice %149 {offsets = [4, 0], sizes = [4, 1], strides = [1, 1]} : vector<8x1xf32> to vector<4x1xf32>
    %155 = arith.addf %151, %154 : vector<4x1xf32>
    %cst_21 = arith.constant 0.001953125 : f32
    %156 = vector.broadcast %cst_21 : f32 to vector<4x1xf32>
    %157 = arith.mulf %153, %156 : vector<4x1xf32>
    %cst_22 = arith.constant 0.001953125 : f32
    %158 = vector.broadcast %cst_22 : f32 to vector<4x1xf32>
    %159 = arith.mulf %155, %158 : vector<4x1xf32>
    %160 = arith.mulf %157, %157 : vector<4x1xf32>
    %161 = arith.subf %159, %160 : vector<4x1xf32>
    %cst_23 = arith.constant 0.000000e+00 : f32
    %162 = vector.broadcast %cst_23 : f32 to vector<4x1xf32>
    %163 = arith.maximumf %161, %162 : vector<4x1xf32>
    %cst_24 = arith.constant 9.99999974E-6 : f32
    %164 = vector.broadcast %cst_24 : f32 to vector<4x1xf32>
    %165 = arith.addf %163, %164 : vector<4x1xf32>
    %166 = math.rsqrt %165 : vector<4x1xf32>
    %167 = arith.mulf %143, %166 : vector<4x1xf32>
    %168 = arith.mulf %157, %167 : vector<4x1xf32>
    %169 = arith.subf %144, %168 : vector<4x1xf32>
    %170 = tpu.concatenate %167, %167 in 0 : vector<4x1xf32>, vector<4x1xf32> -> vector<8x1xf32>
    %171 = tpu.concatenate %169, %169 in 0 : vector<4x1xf32>, vector<4x1xf32> -> vector<8x1xf32>
    %172 = vector.broadcast %170 : vector<8x1xf32> to vector<8x256xf32>
    %173 = arith.mulf %142, %172 : vector<8x256xf32>
    %174 = vector.broadcast %171 : vector<8x1xf32> to vector<8x256xf32>
    %175 = arith.addf %173, %174 : vector<8x256xf32>
    %c0_25 = arith.constant 0 : index
    %c0_26 = arith.constant 0 : index
    %176 = vector.load %arg4[%c0_25, %c0_26] : memref<8x9xf32, #tpu.memory_space<vmem>>, vector<8x9xf32>
    %c0_27 = arith.constant 0 : index
    %c0_28 = arith.constant 0 : index
    %177 = vector.load %arg5[%c0_27, %c0_28] : memref<8x4xf32, #tpu.memory_space<vmem>>, vector<8x4xf32>
    %c0_29 = arith.constant 0 : index
    %c0_30 = arith.constant 0 : index
    %178 = vector.load %arg6[%c0_29, %c0_30] : memref<9x256xf32, #tpu.memory_space<vmem>>, vector<9x256xf32>
    %cst_31 = arith.constant 0.000000e+00 : f32
    %179 = vector.broadcast %cst_31 : f32 to vector<8x256xf32>
    %180 = arith.maximumf %175, %179 : vector<8x256xf32>
    %cst_32 = arith.constant 6.553600e+04 : f32
    %181 = vector.broadcast %cst_32 : f32 to vector<8x256xf32>
    %182 = arith.mulf %180, %181 : vector<8x256xf32>
    %183 = math.floor %182 : vector<8x256xf32>
    %cst_33 = arith.constant 1.52587891E-5 : f32
    %184 = vector.broadcast %cst_33 : f32 to vector<8x256xf32>
    %185 = arith.mulf %183, %184 : vector<8x256xf32>
    %cst_34 = arith.constant -3.276800e+04 : f32
    %cst_35 = arith.constant 3.276700e+04 : f32
    %186 = vector.broadcast %cst_34 : f32 to vector<8x256xf32>
    %187 = arith.maximumf %186, %185 : vector<8x256xf32>
    %188 = vector.broadcast %cst_35 : f32 to vector<8x256xf32>
    %189 = arith.minimumf %188, %187 : vector<8x256xf32>
    %c17_i32_36 = arith.constant 17 : i32
    %190 = tpu.dynamic_rotate %189 by %c17_i32_36 dim 1 : vector<8x256xf32>, i32 -> vector<8x256xf32>
    %191 = vector.extract_strided_slice %178 {offsets = [0, 0], sizes = [1, 256], strides = [1, 1]} : vector<9x256xf32> to vector<1x256xf32>
    %192 = vector.broadcast %191 : vector<1x256xf32> to vector<8x256xf32>
    %193 = arith.mulf %190, %192 : vector<8x256xf32>
    %194 = vector.extract_strided_slice %176 {offsets = [0, 0], sizes = [8, 1], strides = [1, 1]} : vector<8x9xf32> to vector<8x1xf32>
    %195 = vector.broadcast %194 : vector<8x1xf32> to vector<8x256xf32>
    %196 = arith.mulf %193, %195 : vector<8x256xf32>
    %c16_i32_37 = arith.constant 16 : i32
    %197 = tpu.dynamic_rotate %189 by %c16_i32_37 dim 1 : vector<8x256xf32>, i32 -> vector<8x256xf32>
    %198 = vector.extract_strided_slice %178 {offsets = [1, 0], sizes = [1, 256], strides = [1, 1]} : vector<9x256xf32> to vector<1x256xf32>
    %199 = vector.broadcast %198 : vector<1x256xf32> to vector<8x256xf32>
    %200 = arith.mulf %197, %199 : vector<8x256xf32>
    %201 = vector.extract_strided_slice %176 {offsets = [0, 1], sizes = [8, 1], strides = [1, 1]} : vector<8x9xf32> to vector<8x1xf32>
    %202 = vector.broadcast %201 : vector<8x1xf32> to vector<8x256xf32>
    %203 = arith.mulf %200, %202 : vector<8x256xf32>
    %204 = arith.addf %196, %203 : vector<8x256xf32>
    %c15_i32_38 = arith.constant 15 : i32
    %205 = tpu.dynamic_rotate %189 by %c15_i32_38 dim 1 : vector<8x256xf32>, i32 -> vector<8x256xf32>
    %206 = vector.extract_strided_slice %178 {offsets = [2, 0], sizes = [1, 256], strides = [1, 1]} : vector<9x256xf32> to vector<1x256xf32>
    %207 = vector.broadcast %206 : vector<1x256xf32> to vector<8x256xf32>
    %208 = arith.mulf %205, %207 : vector<8x256xf32>
    %209 = vector.extract_strided_slice %176 {offsets = [0, 2], sizes = [8, 1], strides = [1, 1]} : vector<8x9xf32> to vector<8x1xf32>
    %210 = vector.broadcast %209 : vector<8x1xf32> to vector<8x256xf32>
    %211 = arith.mulf %208, %210 : vector<8x256xf32>
    %212 = arith.addf %204, %211 : vector<8x256xf32>
    %c1_i32_39 = arith.constant 1 : i32
    %213 = tpu.dynamic_rotate %189 by %c1_i32_39 dim 1 : vector<8x256xf32>, i32 -> vector<8x256xf32>
    %214 = vector.extract_strided_slice %178 {offsets = [3, 0], sizes = [1, 256], strides = [1, 1]} : vector<9x256xf32> to vector<1x256xf32>
    %215 = vector.broadcast %214 : vector<1x256xf32> to vector<8x256xf32>
    %216 = arith.mulf %213, %215 : vector<8x256xf32>
    %217 = vector.extract_strided_slice %176 {offsets = [0, 3], sizes = [8, 1], strides = [1, 1]} : vector<8x9xf32> to vector<8x1xf32>
    %218 = vector.broadcast %217 : vector<8x1xf32> to vector<8x256xf32>
    %219 = arith.mulf %216, %218 : vector<8x256xf32>
    %220 = arith.addf %212, %219 : vector<8x256xf32>
    %221 = vector.extract_strided_slice %178 {offsets = [4, 0], sizes = [1, 256], strides = [1, 1]} : vector<9x256xf32> to vector<1x256xf32>
    %222 = vector.broadcast %221 : vector<1x256xf32> to vector<8x256xf32>
    %223 = arith.mulf %189, %222 : vector<8x256xf32>
    %224 = vector.extract_strided_slice %176 {offsets = [0, 4], sizes = [8, 1], strides = [1, 1]} : vector<8x9xf32> to vector<8x1xf32>
    %225 = vector.broadcast %224 : vector<8x1xf32> to vector<8x256xf32>
    %226 = arith.mulf %223, %225 : vector<8x256xf32>
    %227 = arith.addf %220, %226 : vector<8x256xf32>
    %c255_i32_40 = arith.constant 255 : i32
    %228 = tpu.dynamic_rotate %189 by %c255_i32_40 dim 1 : vector<8x256xf32>, i32 -> vector<8x256xf32>
    %229 = vector.extract_strided_slice %178 {offsets = [5, 0], sizes = [1, 256], strides = [1, 1]} : vector<9x256xf32> to vector<1x256xf32>
    %230 = vector.broadcast %229 : vector<1x256xf32> to vector<8x256xf32>
    %231 = arith.mulf %228, %230 : vector<8x256xf32>
    %232 = vector.extract_strided_slice %176 {offsets = [0, 5], sizes = [8, 1], strides = [1, 1]} : vector<8x9xf32> to vector<8x1xf32>
    %233 = vector.broadcast %232 : vector<8x1xf32> to vector<8x256xf32>
    %234 = arith.mulf %231, %233 : vector<8x256xf32>
    %235 = arith.addf %227, %234 : vector<8x256xf32>
    %c241_i32_41 = arith.constant 241 : i32
    %236 = tpu.dynamic_rotate %189 by %c241_i32_41 dim 1 : vector<8x256xf32>, i32 -> vector<8x256xf32>
    %237 = vector.extract_strided_slice %178 {offsets = [6, 0], sizes = [1, 256], strides = [1, 1]} : vector<9x256xf32> to vector<1x256xf32>
    %238 = vector.broadcast %237 : vector<1x256xf32> to vector<8x256xf32>
    %239 = arith.mulf %236, %238 : vector<8x256xf32>
    %240 = vector.extract_strided_slice %176 {offsets = [0, 6], sizes = [8, 1], strides = [1, 1]} : vector<8x9xf32> to vector<8x1xf32>
    %241 = vector.broadcast %240 : vector<8x1xf32> to vector<8x256xf32>
    %242 = arith.mulf %239, %241 : vector<8x256xf32>
    %243 = arith.addf %235, %242 : vector<8x256xf32>
    %c240_i32_42 = arith.constant 240 : i32
    %244 = tpu.dynamic_rotate %189 by %c240_i32_42 dim 1 : vector<8x256xf32>, i32 -> vector<8x256xf32>
    %245 = vector.extract_strided_slice %178 {offsets = [7, 0], sizes = [1, 256], strides = [1, 1]} : vector<9x256xf32> to vector<1x256xf32>
    %246 = vector.broadcast %245 : vector<1x256xf32> to vector<8x256xf32>
    %247 = arith.mulf %244, %246 : vector<8x256xf32>
    %248 = vector.extract_strided_slice %176 {offsets = [0, 7], sizes = [8, 1], strides = [1, 1]} : vector<8x9xf32> to vector<8x1xf32>
    %249 = vector.broadcast %248 : vector<8x1xf32> to vector<8x256xf32>
    %250 = arith.mulf %247, %249 : vector<8x256xf32>
    %251 = arith.addf %243, %250 : vector<8x256xf32>
    %c239_i32_43 = arith.constant 239 : i32
    %252 = tpu.dynamic_rotate %189 by %c239_i32_43 dim 1 : vector<8x256xf32>, i32 -> vector<8x256xf32>
    %253 = vector.extract_strided_slice %178 {offsets = [8, 0], sizes = [1, 256], strides = [1, 1]} : vector<9x256xf32> to vector<1x256xf32>
    %254 = vector.broadcast %253 : vector<1x256xf32> to vector<8x256xf32>
    %255 = arith.mulf %252, %254 : vector<8x256xf32>
    %256 = vector.extract_strided_slice %176 {offsets = [0, 8], sizes = [8, 1], strides = [1, 1]} : vector<8x9xf32> to vector<8x1xf32>
    %257 = vector.broadcast %256 : vector<8x1xf32> to vector<8x256xf32>
    %258 = arith.mulf %255, %257 : vector<8x256xf32>
    %259 = arith.addf %251, %258 : vector<8x256xf32>
    %cst_44 = arith.constant 6.553600e+04 : f32
    %260 = vector.broadcast %cst_44 : f32 to vector<8x256xf32>
    %261 = arith.mulf %259, %260 : vector<8x256xf32>
    %262 = math.floor %261 : vector<8x256xf32>
    %cst_45 = arith.constant 1.52587891E-5 : f32
    %263 = vector.broadcast %cst_45 : f32 to vector<8x256xf32>
    %264 = arith.mulf %262, %263 : vector<8x256xf32>
    %cst_46 = arith.constant -3.276800e+04 : f32
    %cst_47 = arith.constant 3.276700e+04 : f32
    %265 = vector.broadcast %cst_46 : f32 to vector<8x256xf32>
    %266 = arith.maximumf %265, %264 : vector<8x256xf32>
    %267 = vector.broadcast %cst_47 : f32 to vector<8x256xf32>
    %268 = arith.minimumf %267, %266 : vector<8x256xf32>
    %269 = vector.extract_strided_slice %268 {offsets = [0, 0], sizes = [4, 256], strides = [1, 1]} : vector<8x256xf32> to vector<4x256xf32>
    %270 = vector.extract_strided_slice %269 {offsets = [0, 0], sizes = [1, 256], strides = [1, 1]} : vector<4x256xf32> to vector<1x256xf32>
    %271 = vector.extract_strided_slice %177 {offsets = [0, 0], sizes = [8, 1], strides = [1, 1]} : vector<8x4xf32> to vector<8x1xf32>
    %272 = vector.broadcast %270 : vector<1x256xf32> to vector<8x256xf32>
    %273 = vector.broadcast %271 : vector<8x1xf32> to vector<8x256xf32>
    %274 = arith.mulf %272, %273 : vector<8x256xf32>
    %275 = vector.extract_strided_slice %269 {offsets = [1, 0], sizes = [1, 256], strides = [1, 1]} : vector<4x256xf32> to vector<1x256xf32>
    %276 = vector.extract_strided_slice %177 {offsets = [0, 1], sizes = [8, 1], strides = [1, 1]} : vector<8x4xf32> to vector<8x1xf32>
    %277 = vector.broadcast %275 : vector<1x256xf32> to vector<8x256xf32>
    %278 = vector.broadcast %276 : vector<8x1xf32> to vector<8x256xf32>
    %279 = arith.mulf %277, %278 : vector<8x256xf32>
    %280 = arith.addf %274, %279 : vector<8x256xf32>
    %281 = vector.extract_strided_slice %269 {offsets = [2, 0], sizes = [1, 256], strides = [1, 1]} : vector<4x256xf32> to vector<1x256xf32>
    %282 = vector.extract_strided_slice %177 {offsets = [0, 2], sizes = [8, 1], strides = [1, 1]} : vector<8x4xf32> to vector<8x1xf32>
    %283 = vector.broadcast %281 : vector<1x256xf32> to vector<8x256xf32>
    %284 = vector.broadcast %282 : vector<8x1xf32> to vector<8x256xf32>
    %285 = arith.mulf %283, %284 : vector<8x256xf32>
    %286 = arith.addf %280, %285 : vector<8x256xf32>
    %287 = vector.extract_strided_slice %269 {offsets = [3, 0], sizes = [1, 256], strides = [1, 1]} : vector<4x256xf32> to vector<1x256xf32>
    %288 = vector.extract_strided_slice %177 {offsets = [0, 3], sizes = [8, 1], strides = [1, 1]} : vector<8x4xf32> to vector<8x1xf32>
    %289 = vector.broadcast %287 : vector<1x256xf32> to vector<8x256xf32>
    %290 = vector.broadcast %288 : vector<8x1xf32> to vector<8x256xf32>
    %291 = arith.mulf %289, %290 : vector<8x256xf32>
    %292 = arith.addf %286, %291 : vector<8x256xf32>
    %293 = vector.extract_strided_slice %268 {offsets = [4, 0], sizes = [4, 256], strides = [1, 1]} : vector<8x256xf32> to vector<4x256xf32>
    %294 = vector.extract_strided_slice %293 {offsets = [0, 0], sizes = [1, 256], strides = [1, 1]} : vector<4x256xf32> to vector<1x256xf32>
    %295 = vector.extract_strided_slice %177 {offsets = [0, 0], sizes = [8, 1], strides = [1, 1]} : vector<8x4xf32> to vector<8x1xf32>
    %296 = vector.broadcast %294 : vector<1x256xf32> to vector<8x256xf32>
    %297 = vector.broadcast %295 : vector<8x1xf32> to vector<8x256xf32>
    %298 = arith.mulf %296, %297 : vector<8x256xf32>
    %299 = vector.extract_strided_slice %293 {offsets = [1, 0], sizes = [1, 256], strides = [1, 1]} : vector<4x256xf32> to vector<1x256xf32>
    %300 = vector.extract_strided_slice %177 {offsets = [0, 1], sizes = [8, 1], strides = [1, 1]} : vector<8x4xf32> to vector<8x1xf32>
    %301 = vector.broadcast %299 : vector<1x256xf32> to vector<8x256xf32>
    %302 = vector.broadcast %300 : vector<8x1xf32> to vector<8x256xf32>
    %303 = arith.mulf %301, %302 : vector<8x256xf32>
    %304 = arith.addf %298, %303 : vector<8x256xf32>
    %305 = vector.extract_strided_slice %293 {offsets = [2, 0], sizes = [1, 256], strides = [1, 1]} : vector<4x256xf32> to vector<1x256xf32>
    %306 = vector.extract_strided_slice %177 {offsets = [0, 2], sizes = [8, 1], strides = [1, 1]} : vector<8x4xf32> to vector<8x1xf32>
    %307 = vector.broadcast %305 : vector<1x256xf32> to vector<8x256xf32>
    %308 = vector.broadcast %306 : vector<8x1xf32> to vector<8x256xf32>
    %309 = arith.mulf %307, %308 : vector<8x256xf32>
    %310 = arith.addf %304, %309 : vector<8x256xf32>
    %311 = vector.extract_strided_slice %293 {offsets = [3, 0], sizes = [1, 256], strides = [1, 1]} : vector<4x256xf32> to vector<1x256xf32>
    %312 = vector.extract_strided_slice %177 {offsets = [0, 3], sizes = [8, 1], strides = [1, 1]} : vector<8x4xf32> to vector<8x1xf32>
    %313 = vector.broadcast %311 : vector<1x256xf32> to vector<8x256xf32>
    %314 = vector.broadcast %312 : vector<8x1xf32> to vector<8x256xf32>
    %315 = arith.mulf %313, %314 : vector<8x256xf32>
    %316 = arith.addf %310, %315 : vector<8x256xf32>
    %317 = tpu.concatenate %292, %316 in 0 : vector<8x256xf32>, vector<8x256xf32> -> vector<16x256xf32>
    %c0_48 = arith.constant 0 : index
    %c0_49 = arith.constant 0 : index
    %318 = vector.load %arg9[%c0_48, %c0_49] : memref<8x1xf32, #tpu.memory_space<vmem>>, vector<8x1xf32>
    %c0_50 = arith.constant 0 : index
    %c0_51 = arith.constant 0 : index
    %319 = vector.load %arg10[%c0_50, %c0_51] : memref<8x1xf32, #tpu.memory_space<vmem>>, vector<8x1xf32>
    %cst_52 = arith.constant dense<0.000000e+00> : vector<16xf32>
    %320 = vector.multi_reduction <add>, %317, %cst_52 [1] : vector<16x256xf32> to vector<16xf32>
    %321 = vector.shape_cast %320 : vector<16xf32> to vector<16x1xf32>
    %322 = arith.mulf %317, %317 : vector<16x256xf32>
    %cst_53 = arith.constant dense<0.000000e+00> : vector<16xf32>
    %323 = vector.multi_reduction <add>, %322, %cst_53 [1] : vector<16x256xf32> to vector<16xf32>
    %324 = vector.shape_cast %323 : vector<16xf32> to vector<16x1xf32>
    %325 = vector.extract_strided_slice %321 {offsets = [0, 0], sizes = [8, 1], strides = [1, 1]} : vector<16x1xf32> to vector<8x1xf32>
    %326 = vector.extract_strided_slice %324 {offsets = [0, 0], sizes = [8, 1], strides = [1, 1]} : vector<16x1xf32> to vector<8x1xf32>
    %327 = vector.extract_strided_slice %321 {offsets = [8, 0], sizes = [8, 1], strides = [1, 1]} : vector<16x1xf32> to vector<8x1xf32>
    %328 = arith.addf %325, %327 : vector<8x1xf32>
    %329 = vector.extract_strided_slice %324 {offsets = [8, 0], sizes = [8, 1], strides = [1, 1]} : vector<16x1xf32> to vector<8x1xf32>
    %330 = arith.addf %326, %329 : vector<8x1xf32>
    %cst_54 = arith.constant 0.001953125 : f32
    %331 = vector.broadcast %cst_54 : f32 to vector<8x1xf32>
    %332 = arith.mulf %328, %331 : vector<8x1xf32>
    %cst_55 = arith.constant 0.001953125 : f32
    %333 = vector.broadcast %cst_55 : f32 to vector<8x1xf32>
    %334 = arith.mulf %330, %333 : vector<8x1xf32>
    %335 = arith.mulf %332, %332 : vector<8x1xf32>
    %336 = arith.subf %334, %335 : vector<8x1xf32>
    %cst_56 = arith.constant 0.000000e+00 : f32
    %337 = vector.broadcast %cst_56 : f32 to vector<8x1xf32>
    %338 = arith.maximumf %336, %337 : vector<8x1xf32>
    %cst_57 = arith.constant 9.99999974E-6 : f32
    %339 = vector.broadcast %cst_57 : f32 to vector<8x1xf32>
    %340 = arith.addf %338, %339 : vector<8x1xf32>
    %341 = math.rsqrt %340 : vector<8x1xf32>
    %342 = arith.mulf %318, %341 : vector<8x1xf32>
    %343 = arith.mulf %332, %342 : vector<8x1xf32>
    %344 = arith.subf %319, %343 : vector<8x1xf32>
    %345 = tpu.concatenate %342, %342 in 0 : vector<8x1xf32>, vector<8x1xf32> -> vector<16x1xf32>
    %346 = tpu.concatenate %344, %344 in 0 : vector<8x1xf32>, vector<8x1xf32> -> vector<16x1xf32>
    %347 = vector.broadcast %345 : vector<16x1xf32> to vector<16x256xf32>
    %348 = arith.mulf %317, %347 : vector<16x256xf32>
    %349 = vector.broadcast %346 : vector<16x1xf32> to vector<16x256xf32>
    %350 = arith.addf %348, %349 : vector<16x256xf32>
    %c0_58 = arith.constant 0 : index
    %c0_59 = arith.constant 0 : index
    %351 = vector.load %arg11[%c0_58, %c0_59] : memref<16x256xf32, #tpu.memory_space<vmem>>, vector<16x256xf32>
    tpu.vector_store %arg11[%c0_58, %c0_59], %350 {strides = array<i32>} : memref<16x256xf32, #tpu.memory_space<vmem>>, vector<16x256xf32>,
    return
  }
}

</mosaic_0001>

<llo_original>
// kernel: sep_conv_forward.1
$region0: #{sep_conv_forward.1}
  #allocation0 [shape = 'u32[]', space=smem, size = 0x4, offset = 0x4, fixed_abs, tag = 'smem constant byte address 0x4 - core index']
  #allocation1 [shape = 'u32[144,128]{1,0:T(1,128)}', space=vmem, size = 0x12000, scoped, tag = 'internal scratch']
  %s0 = inlined_call_operand.vmem [shape: f32[8,256], index: 0, kind: input, shape index: {}]
  %s1 = inlined_call_operand.vmem [shape: f32[8,9], index: 1, kind: input, shape index: {}]
  %s2 = inlined_call_operand.vmem [shape: f32[4,4], index: 2, kind: input, shape index: {}]
  %s3 = inlined_call_operand.vmem [shape: f32[9,256], index: 3, kind: input, shape index: {}, may-alias: {3,6}]
  %s4 = inlined_call_operand.vmem [shape: f32[8,9], index: 4, kind: input, shape index: {}]
  %s5 = inlined_call_operand.vmem [shape: f32[8,4], index: 5, kind: input, shape index: {}]
  %s6 = inlined_call_operand.vmem [shape: f32[9,256], index: 6, kind: input, shape index: {}, may-alias: {3,6}]
  %s7 = inlined_call_operand.vmem [shape: f32[4,1], index: 7, kind: input, shape index: {}]
  %s8 = inlined_call_operand.vmem [shape: f32[4,1], index: 8, kind: input, shape index: {}]
  %s9 = inlined_call_operand.vmem [shape: f32[8,1], index: 9, kind: input, shape index: {}]
  %s10 = inlined_call_operand.vmem [shape: f32[8,1], index: 10, kind: input, shape index: {}]
  %s11 = inlined_call_operand.vmem [shape: f32[16,256], index: 11, kind: output, shape index: {}]
  %s12 = sld [smem:[#allocation0]]
  $region54: #{sep_conv_forward.1} parent=0
    _
  %s14 = ssub.s32 1, %s12
  %s15 = scalar_select 0, %s14, %s12
  // Predicated region
  $region2: #{sep_conv_forward.1} parent=0 // pred_check
    _
  $region3: #{sep_conv_forward.1} parent=0 // pred_check_branch
    %17 = sbr.rel (0) target = $region5
  $region4: #{sep_conv_forward.1} parent=0 // pred_region
    _
  $region5: #{sep_conv_forward.1} parent=0 // pred_fallthru
    _
  // Predicated region
  $region6: #{sep_conv_forward.1} parent=0 // pred_check
    _
  $region7: #{sep_conv_forward.1} parent=0 // pred_check_branch
    %19 = sbr.rel (0) target = $region9
  $region8: #{sep_conv_forward.1} parent=0 // pred_region
    _
  $region9: #{sep_conv_forward.1} parent=0 // pred_fallthru
    _
  // Predicated region
  $region10: #{sep_conv_forward.1} parent=0 // pred_check
    _
  $region11: #{sep_conv_forward.1} parent=0 // pred_check_branch
    %21 = sbr.rel (0) target = $region13
  $region12: #{sep_conv_forward.1} parent=0 // pred_region
    _
  $region13: #{sep_conv_forward.1} parent=0 // pred_fallthru
    _
  // Predicated region
  $region14: #{sep_conv_forward.1} parent=0 // pred_check
    _
  $region15: #{sep_conv_forward.1} parent=0 // pred_check_branch
    %23 = sbr.rel (0) target = $region17
  $region16: #{sep_conv_forward.1} parent=0 // pred_region
    _
  $region17: #{sep_conv_forward.1} parent=0 // pred_fallthru
    _
  // Predicated region
  $region18: #{sep_conv_forward.1} parent=0 // pred_check
    _
  $region19: #{sep_conv_forward.1} parent=0 // pred_check_branch
    %25 = sbr.rel (0) target = $region21
  $region20: #{sep_conv_forward.1} parent=0 // pred_region
    _
  $region21: #{sep_conv_forward.1} parent=0 // pred_fallthru
    _
  // Predicated region
  $region22: #{sep_conv_forward.1} parent=0 // pred_check
    _
  $region23: #{sep_conv_forward.1} parent=0 // pred_check_branch
    %27 = sbr.rel (0) target = $region25
  $region24: #{sep_conv_forward.1} parent=0 // pred_region
    _
  $region25: #{sep_conv_forward.1} parent=0 // pred_fallthru
    _
  // Predicated region
  $region26: #{sep_conv_forward.1} parent=0 // pred_check
    _
  $region27: #{sep_conv_forward.1} parent=0 // pred_check_branch
    %29 = sbr.rel (0) target = $region29
  $region28: #{sep_conv_forward.1} parent=0 // pred_region
    _
  $region29: #{sep_conv_forward.1} parent=0 // pred_fallthru
    _
  // Predicated region
  $region30: #{sep_conv_forward.1} parent=0 // pred_check
    _
  $region31: #{sep_conv_forward.1} parent=0 // pred_check_branch
    %31 = sbr.rel (0) target = $region33
  $region32: #{sep_conv_forward.1} parent=0 // pred_region
    _
  $region33: #{sep_conv_forward.1} parent=0 // pred_fallthru
    _
  // Predicated region
  $region34: #{sep_conv_forward.1} parent=0 // pred_check
    _
  $region35: #{sep_conv_forward.1} parent=0 // pred_check_branch
    %33 = sbr.rel (0) target = $region37
  $region36: #{sep_conv_forward.1} parent=0 // pred_region
    _
  $region37: #{sep_conv_forward.1} parent=0 // pred_fallthru
    _
  // Predicated region
  $region38: #{sep_conv_forward.1} parent=0 // pred_check
    _
  $region39: #{sep_conv_forward.1} parent=0 // pred_check_branch
    %35 = sbr.rel (0) target = $region41
  $region40: #{sep_conv_forward.1} parent=0 // pred_region
    _
  $region41: #{sep_conv_forward.1} parent=0 // pred_fallthru
    _
  // Predicated region
  $region42: #{sep_conv_forward.1} parent=0 // pred_check
    _
  $region43: #{sep_conv_forward.1} parent=0 // pred_check_branch
    %37 = sbr.rel (0) target = $region45
  $region44: #{sep_conv_forward.1} parent=0 // pred_region
    _
  $region45: #{sep_conv_forward.1} parent=0 // pred_fallthru
    _
  %v38 = vld [vmem:[%s0] sm:$0xff]
  %v39 = vld [vmem:[%s0 + $0x8] sm:$0xff]
  %v40 = vld [vmem:[%s1] sm:$0xff]
  %v41 = vld [vmem:[%s2] sm:$0xf]
  %v42 = vld [vmem:[%s3] sm:$0xff]
  %v43 = vld [vmem:[%s3 + $0x8] sm:$0xff]
  %v44 = vld [vmem:[%s3 + $0x10] sm:$0x1]
  %v45 = vld [vmem:[%s3 + $0x18] sm:$0x1]
  %v46 = vmax.f32 %v38, 0.0
  %v47 = vmax.f32 %v39, 0.0
  %v48 = vmul.f32 %v46, 65536.0
  %v49 = vmul.f32 %v47, 65536.0
  %v50 = vfloor.f32 %v48
  %v51 = vfloor.f32 %v49
  %v52 = vmul.f32 %v50, 1.5258789e-05
  %v53 = vmul.f32 %v51, 1.5258789e-05
  %v54 = vmax.f32 %v52, -32768.0
  %v55 = vmax.f32 %v53, -32768.0
  %v56 = vmin.f32 %v54, 32767.0
  %v57 = vmin.f32 %v55, 32767.0
  %58 = vrot.lane.b32.xlu0 %v56, 17
  %v59 = vpop.permute.xlu0 %58
  %60 = vrot.lane.b32.xlu0 %v57, 17
  %v61 = vpop.permute.xlu0 %60
  %v62 = vlaneseq
  %v63 = vand.u32 %v62, 127
  %vm64 = vcmp.lt.s32.totalorder %v63, 17
  %v65 = vsel %vm64, %v59, %v61
  %v66 = vsel %vm64, %v61, %v59
  %v67 = vlaneseq
  %v68 = vshrl.u32 %v67, 7
  %v69 = vsub.s32 0, %v68
  %v70 = vrot.slane %v42, %v69
  %v71 = vlaneseq
  %v72 = vshrl.u32 %v71, 7
  %v73 = vsub.s32 0, %v72
  %v74 = vrot.slane %v43, %v73
  %v75 = vmul.f32 %v66, %v70
  %v76 = vmul.f32 %v65, %v74
  %78 = vset.pattern.permute.xlu0 0
  %79 = vperm.xlu0 %78, %v40
  %v80 = vpop.permute.xlu0 %79
  %v82 = vmul.f32 %v75, %v80
  %v83 = vmul.f32 %v76, %v80
  %84 = vrot.lane.b32.xlu0 %v56, 16
  %v85 = vpop.permute.xlu0 %84
  %86 = vrot.lane.b32.xlu0 %v57, 16
  %v87 = vpop.permute.xlu0 %86
  %vm88 = vcmp.lt.s32.totalorder %v63, 16
  %v89 = vsel %vm88, %v85, %v87
  %v90 = vsel %vm88, %v87, %v85
  %v91 = vlaneseq
  %v92 = vshrl.u32 %v91, 7
  %v93 = vsub.s32 1, %v92
  %v94 = vrot.slane %v42, %v93
  %v95 = vlaneseq
  %v96 = vshrl.u32 %v95, 7
  %v97 = vsub.s32 1, %v96
  %v98 = vrot.slane %v43, %v97
  %v99 = vmul.f32 %v90, %v94
  %v100 = vmul.f32 %v89, %v98
  %101 = vset.pattern.permute.xlu0 1
  %102 = vperm.xlu0 %101, %v40
  %v103 = vpop.permute.xlu0 %102
  %v105 = vmul.f32 %v99, %v103
  %v106 = vmul.f32 %v100, %v103
  %v107 = vadd.f32 %v82, %v105
  %v108 = vadd.f32 %v83, %v106
  %109 = vrot.lane.b32.xlu0 %v56, 15
  %v110 = vpop.permute.xlu0 %109
  %111 = vrot.lane.b32.xlu0 %v57, 15
  %v112 = vpop.permute.xlu0 %111
  %vm113 = vcmp.lt.s32.totalorder %v63, 15
  %v114 = vsel %vm113, %v110, %v112
  %v115 = vsel %vm113, %v112, %v110
  %v116 = vlaneseq
  %v117 = vshrl.u32 %v116, 7
  %v118 = vsub.s32 2, %v117
  %v119 = vrot.slane %v42, %v118
  %v120 = vlaneseq
  %v121 = vshrl.u32 %v120, 7
  %v122 = vsub.s32 2, %v121
  %v123 = vrot.slane %v43, %v122
  %v124 = vmul.f32 %v115, %v119
  %v125 = vmul.f32 %v114, %v123
  %126 = vset.pattern.permute.xlu0 2
  %127 = vperm.xlu0 %126, %v40
  %v128 = vpop.permute.xlu0 %127
  %v130 = vmul.f32 %v124, %v128
  %v131 = vmul.f32 %v125, %v128
  %v132 = vadd.f32 %v107, %v130
  %v133 = vadd.f32 %v108, %v131
  %134 = vrot.lane.b32.xlu0 %v56, 1
  %v135 = vpop.permute.xlu0 %134
  %136 = vrot.lane.b32.xlu0 %v57, 1
  %v137 = vpop.permute.xlu0 %136
  %vm138 = vcmp.lt.s32.totalorder %v63, 1
  %v139 = vsel %vm138, %v135, %v137
  %v140 = vsel %vm138, %v137, %v135
  %v141 = vlaneseq
  %v142 = vshrl.u32 %v141, 7
  %v143 = vsub.s32 3, %v142
  %v144 = vrot.slane %v42, %v143
  %v145 = vlaneseq
  %v146 = vshrl.u32 %v145, 7
  %v147 = vsub.s32 3, %v146
  %v148 = vrot.slane %v43, %v147
  %v149 = vmul.f32 %v140, %v144
  %v150 = vmul.f32 %v139, %v148
  %151 = vset.pattern.permute.xlu0 3
  %152 = vperm.xlu0 %151, %v40
  %v153 = vpop.permute.xlu0 %152
  %v155 = vmul.f32 %v149, %v153
  %v156 = vmul.f32 %v150, %v153
  %v157 = vadd.f32 %v132, %v155
  %v158 = vadd.f32 %v133, %v156
  %v159 = vlaneseq
  %v160 = vshrl.u32 %v159, 7
  %v161 = vsub.s32 4, %v160
  %v162 = vrot.slane %v42, %v161
  %v163 = vlaneseq
  %v164 = vshrl.u32 %v163, 7
  %v165 = vsub.s32 4, %v164
  %v166 = vrot.slane %v43, %v165
  %v167 = vmul.f32 %v56, %v162
  %v168 = vmul.f32 %v57, %v166
  %169 = vset.pattern.permute.xlu0 4
  %170 = vperm.xlu0 %169, %v40
  %v171 = vpop.permute.xlu0 %170
  %v173 = vmul.f32 %v167, %v171
  %v174 = vmul.f32 %v168, %v171
  %v175 = vadd.f32 %v157, %v173
  %v176 = vadd.f32 %v158, %v174
  %177 = vrot.lane.b32.xlu0 %v56, 127
  %v178 = vpop.permute.xlu0 %177
  %179 = vrot.lane.b32.xlu0 %v57, 127
  %v180 = vpop.permute.xlu0 %179
  %vm181 = vcmp.lt.s32.totalorder %v63, 127
  %v182 = vsel %vm181, %v178, %v180
  %v183 = vsel %vm181, %v180, %v178
  %v184 = vlaneseq
  %v185 = vshrl.u32 %v184, 7
  %v186 = vsub.s32 5, %v185
  %v187 = vrot.slane %v42, %v186
  %v188 = vlaneseq
  %v189 = vshrl.u32 %v188, 7
  %v190 = vsub.s32 5, %v189
  %v191 = vrot.slane %v43, %v190
  %v192 = vmul.f32 %v182, %v187
  %v193 = vmul.f32 %v183, %v191
  %194 = vset.pattern.permute.xlu0 5
  %195 = vperm.xlu0 %194, %v40
  %v196 = vpop.permute.xlu0 %195
  %v198 = vmul.f32 %v192, %v196
  %v199 = vmul.f32 %v193, %v196
  %v200 = vadd.f32 %v175, %v198
  %v201 = vadd.f32 %v176, %v199
  %202 = vrot.lane.b32.xlu0 %v56, 113
  %v203 = vpop.permute.xlu0 %202
  %204 = vrot.lane.b32.xlu0 %v57, 113
  %v205 = vpop.permute.xlu0 %204
  %vm206 = vcmp.lt.s32.totalorder %v63, 113
  %v207 = vsel %vm206, %v203, %v205
  %v208 = vsel %vm206, %v205, %v203
  %v209 = vlaneseq
  %v210 = vshrl.u32 %v209, 7
  %v211 = vsub.s32 6, %v210
  %v212 = vrot.slane %v42, %v211
  %v213 = vlaneseq
  %v214 = vshrl.u32 %v213, 7
  %v215 = vsub.s32 6, %v214
  %v216 = vrot.slane %v43, %v215
  %v217 = vmul.f32 %v207, %v212
  %v218 = vmul.f32 %v208, %v216
  %219 = vset.pattern.permute.xlu0 6
  %220 = vperm.xlu0 %219, %v40
  %v221 = vpop.permute.xlu0 %220
  %v223 = vmul.f32 %v217, %v221
  %v224 = vmul.f32 %v218, %v221
  %v225 = vadd.f32 %v200, %v223
  %v226 = vadd.f32 %v201, %v224
  %227 = vrot.lane.b32.xlu0 %v56, 112
  %v228 = vpop.permute.xlu0 %227
  %229 = vrot.lane.b32.xlu0 %v57, 112
  %v230 = vpop.permute.xlu0 %229
  %vm231 = vcmp.lt.s32.totalorder %v63, 112
  %v232 = vsel %vm231, %v228, %v230
  %v233 = vsel %vm231, %v230, %v228
  %v234 = vlaneseq
  %v235 = vshrl.u32 %v234, 7
  %v236 = vsub.s32 7, %v235
  %v237 = vrot.slane %v42, %v236
  %v238 = vlaneseq
  %v239 = vshrl.u32 %v238, 7
  %v240 = vsub.s32 7, %v239
  %v241 = vrot.slane %v43, %v240
  %v242 = vmul.f32 %v232, %v237
  %v243 = vmul.f32 %v233, %v241
  %244 = vset.pattern.permute.xlu0 7
  %245 = vperm.xlu0 %244, %v40
  %v246 = vpop.permute.xlu0 %245
  %v248 = vmul.f32 %v242, %v246
  %v249 = vmul.f32 %v243, %v246
  %v250 = vadd.f32 %v225, %v248
  %v251 = vadd.f32 %v226, %v249
  %252 = vrot.lane.b32.xlu0 %v56, 111
  %v253 = vpop.permute.xlu0 %252
  %254 = vrot.lane.b32.xlu0 %v57, 111
  %v255 = vpop.permute.xlu0 %254
  %vm256 = vcmp.lt.s32.totalorder %v63, 111
  %v257 = vsel %vm256, %v253, %v255
  %v258 = vsel %vm256, %v255, %v253
  %v259 = vlaneseq
  %v260 = vshrl.u32 %v259, 7
  %v261 = vsub.s32 0, %v260
  %v262 = vrot.slane %v44, %v261
  %v263 = vlaneseq
  %v264 = vshrl.u32 %v263, 7
  %v265 = vsub.s32 0, %v264
  %v266 = vrot.slane %v45, %v265
  %v267 = vmul.f32 %v257, %v262
  %v268 = vmul.f32 %v258, %v266
  %269 = vset.pattern.permute.xlu0 8
  %270 = vperm.xlu0 %269, %v40
  %v271 = vpop.permute.xlu0 %270
  %v273 = vmul.f32 %v267, %v271
  %v274 = vmul.f32 %v268, %v271
  %v275 = vadd.f32 %v250, %v273
  %v276 = vadd.f32 %v251, %v274
  %v277 = vmul.f32 %v275, 65536.0
  %v278 = vmul.f32 %v276, 65536.0
  %v279 = vfloor.f32 %v277
  %v280 = vfloor.f32 %v278
  %v281 = vmul.f32 %v279, 1.5258789e-05
  %v282 = vmul.f32 %v280, 1.5258789e-05
  %v283 = vmax.f32 %v281, -32768.0
  %v284 = vmax.f32 %v282, -32768.0
  %v285 = vmin.f32 %v283, 32767.0
  %v286 = vmin.f32 %v284, 32767.0
  %v287 = vlaneseq
  %v288 = vshrl.u32 %v287, 7
  %v289 = vsub.s32 0, %v288
  %v290 = vrot.slane %v285, %v289
  %v291 = vlaneseq
  %v292 = vshrl.u32 %v291, 7
  %v293 = vsub.s32 0, %v292
  %v294 = vrot.slane %v286, %v293
  %296 = vset.pattern.permute.xlu0 0
  %297 = vperm.xlu0 %296, %v41
  %v298 = vpop.permute.xlu0 %297
  %v300 = vmul.f32 %v290, %v298
  %v301 = vmul.f32 %v294, %v298
  %v302 = vlaneseq
  %v303 = vshrl.u32 %v302, 7
  %v304 = vsub.s32 1, %v303
  %v305 = vrot.slane %v285, %v304
  %v306 = vlaneseq
  %v307 = vshrl.u32 %v306, 7
  %v308 = vsub.s32 1, %v307
  %v309 = vrot.slane %v286, %v308
  %310 = vset.pattern.permute.xlu0 1
  %311 = vperm.xlu0 %310, %v41
  %v312 = vpop.permute.xlu0 %311
  %v314 = vmul.f32 %v305, %v312
  %v315 = vmul.f32 %v309, %v312
  %v316 = vadd.f32 %v300, %v314
  %v317 = vadd.f32 %v301, %v315
  %v318 = vlaneseq
  %v319 = vshrl.u32 %v318, 7
  %v320 = vsub.s32 2, %v319
  %v321 = vrot.slane %v285, %v320
  %v322 = vlaneseq
  %v323 = vshrl.u32 %v322, 7
  %v324 = vsub.s32 2, %v323
  %v325 = vrot.slane %v286, %v324
  %326 = vset.pattern.permute.xlu0 2
  %327 = vperm.xlu0 %326, %v41
  %v328 = vpop.permute.xlu0 %327
  %v330 = vmul.f32 %v321, %v328
  %v331 = vmul.f32 %v325, %v328
  %v332 = vadd.f32 %v316, %v330
  %v333 = vadd.f32 %v317, %v331
  %v334 = vlaneseq
  %v335 = vshrl.u32 %v334, 7
  %v336 = vsub.s32 3, %v335
  %v337 = vrot.slane %v285, %v336
  %v338 = vlaneseq
  %v339 = vshrl.u32 %v338, 7
  %v340 = vsub.s32 3, %v339
  %v341 = vrot.slane %v286, %v340
  %342 = vset.pattern.permute.xlu0 3
  %343 = vperm.xlu0 %342, %v41
  %v344 = vpop.permute.xlu0 %343
  %v346 = vmul.f32 %v337, %v344
  %v347 = vmul.f32 %v341, %v344
  %v348 = vadd.f32 %v332, %v346
  %v349 = vadd.f32 %v333, %v347
  %v350 = vlaneseq
  %v351 = vshrl.u32 %v350, 7
  %v352 = vsub.s32 4, %v351
  %v353 = vrot.slane %v285, %v352
  %v354 = vlaneseq
  %v355 = vshrl.u32 %v354, 7
  %v356 = vsub.s32 4, %v355
  %v357 = vrot.slane %v286, %v356
  %v358 = vmul.f32 %v353, %v298
  %v359 = vmul.f32 %v357, %v298
  %v360 = vlaneseq
  %v361 = vshrl.u32 %v360, 7
  %v362 = vsub.s32 5, %v361
  %v363 = vrot.slane %v285, %v362
  %v364 = vlaneseq
  %v365 = vshrl.u32 %v364, 7
  %v366 = vsub.s32 5, %v365
  %v367 = vrot.slane %v286, %v366
  %v368 = vmul.f32 %v363, %v312
  %v369 = vmul.f32 %v367, %v312
  %v370 = vadd.f32 %v358, %v368
  %v371 = vadd.f32 %v359, %v369
  %v372 = vlaneseq
  %v373 = vshrl.u32 %v372, 7
  %v374 = vsub.s32 6, %v373
  %v375 = vrot.slane %v285, %v374
  %v376 = vlaneseq
  %v377 = vshrl.u32 %v376, 7
  %v378 = vsub.s32 6, %v377
  %v379 = vrot.slane %v286, %v378
  %v380 = vmul.f32 %v375, %v328
  %v381 = vmul.f32 %v379, %v328
  %v382 = vadd.f32 %v370, %v380
  %v383 = vadd.f32 %v371, %v381
  %v384 = vlaneseq
  %v385 = vshrl.u32 %v384, 7
  %v386 = vsub.s32 7, %v385
  %v387 = vrot.slane %v285, %v386
  %v388 = vlaneseq
  %v389 = vshrl.u32 %v388, 7
  %v390 = vsub.s32 7, %v389
  %v391 = vrot.slane %v286, %v390
  %v392 = vmul.f32 %v387, %v344
  %v393 = vmul.f32 %v391, %v344
  %v394 = vadd.f32 %v382, %v392
  %v395 = vadd.f32 %v383, %v393
  %v398 = vrot.slane %v394, 4
  %v399 = vrot.slane %v395, 4
  %vm402 = vcmask 1043456
  %v403 = vsel %vm402, %v348, %v398
  %v404 = vsel %vm402, %v349, %v399
  %v405 = vld [vmem:[%s7] sm:$0xf]
  %v406 = vld [vmem:[%s8] sm:$0xf]
  %v407 = vadd.f32 %v403, %v404
  %408 = vadd.xlane.f32.xlu0 %v407
  %v409 = vpop.xlane.xlu0 %408
  %v410 = vmul.f32 %v403, %v403
  %v411 = vmul.f32 %v404, %v404
  %v412 = vadd.f32 %v410, %v411
  %413 = vadd.xlane.f32.xlu0 %v412
  %v414 = vpop.xlane.xlu0 %413
  %v416 = vrot.slane %v409, 4
  %v418 = vadd.f32 %v409, %v416
  %v420 = vrot.slane %v414, 4
  %v422 = vadd.f32 %v414, %v420
  %v423 = vmul.f32 %v418, 0.001953125
  %v424 = vmul.f32 %v422, 0.001953125
  %v425 = vmul.f32 %v423, %v423
  %v426 = vsub.f32 %v424, %v425
  %v427 = vmax.f32 %v426, 0.0
  %v428 = vadd.f32 %v427, 1e-05
  %v429 = vrsqrt.pop %v428
  %v430 = vmul.f32 %v405, %v429
  %v431 = vmul.f32 %v423, %v430
  %v432 = vsub.f32 %v406, %v431
  %v434 = vrot.slane %v430, 4
  %v436 = vsel %vm402, %v430, %v434
  %v438 = vrot.slane %v432, 4
  %v440 = vsel %vm402, %v432, %v438
  %442 = vset.pattern.permute.xlu0 0
  %443 = vperm.xlu0 %442, %v436
  %v444 = vpop.permute.xlu0 %443
  %v446 = vmul.f32 %v403, %v444
  %v447 = vmul.f32 %v404, %v444
  %449 = vset.pattern.permute.xlu0 0
  %450 = vperm.xlu0 %449, %v440
  %v451 = vpop.permute.xlu0 %450
  %v453 = vadd.f32 %v446, %v451
  %v454 = vadd.f32 %v447, %v451
  %v455 = vld [vmem:[%s4] sm:$0xff]
  %v456 = vld [vmem:[%s5] sm:$0xff]
  %v457 = vld [vmem:[%s6] sm:$0xff]
  %v458 = vld [vmem:[%s6 + $0x8] sm:$0xff]
  %v459 = vld [vmem:[%s6 + $0x10] sm:$0x1]
  %v460 = vld [vmem:[%s6 + $0x18] sm:$0x1]
  %v461 = vmax.f32 %v453, 0.0
  %v462 = vmax.f32 %v454, 0.0
  %v463 = vmul.f32 %v461, 65536.0
  %v464 = vmul.f32 %v462, 65536.0
  %v465 = vfloor.f32 %v463
  %v466 = vfloor.f32 %v464
  %v467 = vmul.f32 %v465, 1.5258789e-05
  %v468 = vmul.f32 %v466, 1.5258789e-05
  %v469 = vmax.f32 %v467, -32768.0
  %v470 = vmax.f32 %v468, -32768.0
  %v471 = vmin.f32 %v469, 32767.0
  %v472 = vmin.f32 %v470, 32767.0
  %473 = vrot.lane.b32.xlu0 %v471, 17
  %v474 = vpop.permute.xlu0 %473
  %475 = vrot.lane.b32.xlu0 %v472, 17
  %v476 = vpop.permute.xlu0 %475
  %v477 = vsel %vm64, %v474, %v476
  %v478 = vsel %vm64, %v476, %v474
  %v479 = vlaneseq
  %v480 = vshrl.u32 %v479, 7
  %v481 = vsub.s32 0, %v480
  %v482 = vrot.slane %v457, %v481
  %v483 = vlaneseq
  %v484 = vshrl.u32 %v483, 7
  %v485 = vsub.s32 0, %v484
  %v486 = vrot.slane %v458, %v485
  %v487 = vmul.f32 %v478, %v482
  %v488 = vmul.f32 %v477, %v486
  %490 = vset.pattern.permute.xlu0 0
  %491 = vperm.xlu0 %490, %v455
  %v492 = vpop.permute.xlu0 %491
  %v494 = vmul.f32 %v487, %v492
  %v495 = vmul.f32 %v488, %v492
  %496 = vrot.lane.b32.xlu0 %v471, 16
  %v497 = vpop.permute.xlu0 %496
  %498 = vrot.lane.b32.xlu0 %v472, 16
  %v499 = vpop.permute.xlu0 %498
  %v500 = vsel %vm88, %v497, %v499
  %v501 = vsel %vm88, %v499, %v497
  %v502 = vlaneseq
  %v503 = vshrl.u32 %v502, 7
  %v504 = vsub.s32 1, %v503
  %v505 = vrot.slane %v457, %v504
  %v506 = vlaneseq
  %v507 = vshrl.u32 %v506, 7
  %v508 = vsub.s32 1, %v507
  %v509 = vrot.slane %v458, %v508
  %v510 = vmul.f32 %v501, %v505
  %v511 = vmul.f32 %v500, %v509
  %512 = vset.pattern.permute.xlu0 1
  %513 = vperm.xlu0 %512, %v455
  %v514 = vpop.permute.xlu0 %513
  %v516 = vmul.f32 %v510, %v514
  %v517 = vmul.f32 %v511, %v514
  %v518 = vadd.f32 %v494, %v516
  %v519 = vadd.f32 %v495, %v517
  %520 = vrot.lane.b32.xlu0 %v471, 15
  %v521 = vpop.permute.xlu0 %520
  %522 = vrot.lane.b32.xlu0 %v472, 15
  %v523 = vpop.permute.xlu0 %522
  %v524 = vsel %vm113, %v521, %v523
  %v525 = vsel %vm113, %v523, %v521
  %v526 = vlaneseq
  %v527 = vshrl.u32 %v526, 7
  %v528 = vsub.s32 2, %v527
  %v529 = vrot.slane %v457, %v528
  %v530 = vlaneseq
  %v531 = vshrl.u32 %v530, 7
  %v532 = vsub.s32 2, %v531
  %v533 = vrot.slane %v458, %v532
  %v534 = vmul.f32 %v525, %v529
  %v535 = vmul.f32 %v524, %v533
  %536 = vset.pattern.permute.xlu0 2
  %537 = vperm.xlu0 %536, %v455
  %v538 = vpop.permute.xlu0 %537
  %v540 = vmul.f32 %v534, %v538
  %v541 = vmul.f32 %v535, %v538
  %v542 = vadd.f32 %v518, %v540
  %v543 = vadd.f32 %v519, %v541
  %544 = vrot.lane.b32.xlu0 %v471, 1
  %v545 = vpop.permute.xlu0 %544
  %546 = vrot.lane.b32.xlu0 %v472, 1
  %v547 = vpop.permute.xlu0 %546
  %v548 = vsel %vm138, %v545, %v547
  %v549 = vsel %vm138, %v547, %v545
  %v550 = vlaneseq
  %v551 = vshrl.u32 %v550, 7
  %v552 = vsub.s32 3, %v551
  %v553 = vrot.slane %v457, %v552
  %v554 = vlaneseq
  %v555 = vshrl.u32 %v554, 7
  %v556 = vsub.s32 3, %v555
  %v557 = vrot.slane %v458, %v556
  %v558 = vmul.f32 %v549, %v553
  %v559 = vmul.f32 %v548, %v557
  %560 = vset.pattern.permute.xlu0 3
  %561 = vperm.xlu0 %560, %v455
  %v562 = vpop.permute.xlu0 %561
  %v564 = vmul.f32 %v558, %v562
  %v565 = vmul.f32 %v559, %v562
  %v566 = vadd.f32 %v542, %v564
  %v567 = vadd.f32 %v543, %v565
  %v568 = vlaneseq
  %v569 = vshrl.u32 %v568, 7
  %v570 = vsub.s32 4, %v569
  %v571 = vrot.slane %v457, %v570
  %v572 = vlaneseq
  %v573 = vshrl.u32 %v572, 7
  %v574 = vsub.s32 4, %v573
  %v575 = vrot.slane %v458, %v574
  %v576 = vmul.f32 %v471, %v571
  %v577 = vmul.f32 %v472, %v575
  %578 = vset.pattern.permute.xlu0 4
  %579 = vperm.xlu0 %578, %v455
  %v580 = vpop.permute.xlu0 %579
  %v582 = vmul.f32 %v576, %v580
  %v583 = vmul.f32 %v577, %v580
  %v584 = vadd.f32 %v566, %v582
  %v585 = vadd.f32 %v567, %v583
  %586 = vrot.lane.b32.xlu0 %v471, 127
  %v587 = vpop.permute.xlu0 %586
  %588 = vrot.lane.b32.xlu0 %v472, 127
  %v589 = vpop.permute.xlu0 %588
  %v590 = vsel %vm181, %v587, %v589
  %v591 = vsel %vm181, %v589, %v587
  %v592 = vlaneseq
  %v593 = vshrl.u32 %v592, 7
  %v594 = vsub.s32 5, %v593
  %v595 = vrot.slane %v457, %v594
  %v596 = vlaneseq
  %v597 = vshrl.u32 %v596, 7
  %v598 = vsub.s32 5, %v597
  %v599 = vrot.slane %v458, %v598
  %v600 = vmul.f32 %v590, %v595
  %v601 = vmul.f32 %v591, %v599
  %602 = vset.pattern.permute.xlu0 5
  %603 = vperm.xlu0 %602, %v455
  %v604 = vpop.permute.xlu0 %603
  %v606 = vmul.f32 %v600, %v604
  %v607 = vmul.f32 %v601, %v604
  %v608 = vadd.f32 %v584, %v606
  %v609 = vadd.f32 %v585, %v607
  %610 = vrot.lane.b32.xlu0 %v471, 113
  %v611 = vpop.permute.xlu0 %610
  %612 = vrot.lane.b32.xlu0 %v472, 113
  %v613 = vpop.permute.xlu0 %612
  %v614 = vsel %vm206, %v611, %v613
  %v615 = vsel %vm206, %v613, %v611
  %v616 = vlaneseq
  %v617 = vshrl.u32 %v616, 7
  %v618 = vsub.s32 6, %v617
  %v619 = vrot.slane %v457, %v618
  %v620 = vlaneseq
  %v621 = vshrl.u32 %v620, 7
  %v622 = vsub.s32 6, %v621
  %v623 = vrot.slane %v458, %v622
  %v624 = vmul.f32 %v614, %v619
  %v625 = vmul.f32 %v615, %v623
  %626 = vset.pattern.permute.xlu0 6
  %627 = vperm.xlu0 %626, %v455
  %v628 = vpop.permute.xlu0 %627
  %v630 = vmul.f32 %v624, %v628
  %v631 = vmul.f32 %v625, %v628
  %v632 = vadd.f32 %v608, %v630
  %v633 = vadd.f32 %v609, %v631
  %634 = vrot.lane.b32.xlu0 %v471, 112
  %v635 = vpop.permute.xlu0 %634
  %636 = vrot.lane.b32.xlu0 %v472, 112
  %v637 = vpop.permute.xlu0 %636
  %v638 = vsel %vm231, %v635, %v637
  %v639 = vsel %vm231, %v637, %v635
  %v640 = vlaneseq
  %v641 = vshrl.u32 %v640, 7
  %v642 = vsub.s32 7, %v641
  %v643 = vrot.slane %v457, %v642
  %v644 = vlaneseq
  %v645 = vshrl.u32 %v644, 7
  %v646 = vsub.s32 7, %v645
  %v647 = vrot.slane %v458, %v646
  %v648 = vmul.f32 %v638, %v643
  %v649 = vmul.f32 %v639, %v647
  %650 = vset.pattern.permute.xlu0 7
  %651 = vperm.xlu0 %650, %v455
  %v652 = vpop.permute.xlu0 %651
  %v654 = vmul.f32 %v648, %v652
  %v655 = vmul.f32 %v649, %v652
  %v656 = vadd.f32 %v632, %v654
  %v657 = vadd.f32 %v633, %v655
  %658 = vrot.lane.b32.xlu0 %v471, 111
  %v659 = vpop.permute.xlu0 %658
  %660 = vrot.lane.b32.xlu0 %v472, 111
  %v661 = vpop.permute.xlu0 %660
  %v662 = vsel %vm256, %v659, %v661
  %v663 = vsel %vm256, %v661, %v659
  %v664 = vlaneseq
  %v665 = vshrl.u32 %v664, 7
  %v666 = vsub.s32 0, %v665
  %v667 = vrot.slane %v459, %v666
  %v668 = vlaneseq
  %v669 = vshrl.u32 %v668, 7
  %v670 = vsub.s32 0, %v669
  %v671 = vrot.slane %v460, %v670
  %v672 = vmul.f32 %v662, %v667
  %v673 = vmul.f32 %v663, %v671
  %674 = vset.pattern.permute.xlu0 8
  %675 = vperm.xlu0 %674, %v455
  %v676 = vpop.permute.xlu0 %675
  %v678 = vmul.f32 %v672, %v676
  %v679 = vmul.f32 %v673, %v676
  %v680 = vadd.f32 %v656, %v678
  %v681 = vadd.f32 %v657, %v679
  %v682 = vmul.f32 %v680, 65536.0
  %v683 = vmul.f32 %v681, 65536.0
  %v684 = vfloor.f32 %v682
  %v685 = vfloor.f32 %v683
  %v686 = vmul.f32 %v684, 1.5258789e-05
  %v687 = vmul.f32 %v685, 1.5258789e-05
  %v688 = vmax.f32 %v686, -32768.0
  %v689 = vmax.f32 %v687, -32768.0
  %v690 = vmin.f32 %v688, 32767.0
  %v691 = vmin.f32 %v689, 32767.0
  %v692 = vlaneseq
  %v693 = vshrl.u32 %v692, 7
  %v694 = vsub.s32 0, %v693
  %v695 = vrot.slane %v690, %v694
  %v696 = vlaneseq
  %v697 = vshrl.u32 %v696, 7
  %v698 = vsub.s32 0, %v697
  %v699 = vrot.slane %v691, %v698
  %701 = vset.pattern.permute.xlu0 0
  %702 = vperm.xlu0 %701, %v456
  %v703 = vpop.permute.xlu0 %702
  %v705 = vmul.f32 %v695, %v703
  %v706 = vmul.f32 %v699, %v703
  %v707 = vlaneseq
  %v708 = vshrl.u32 %v707, 7
  %v709 = vsub.s32 1, %v708
  %v710 = vrot.slane %v690, %v709
  %v711 = vlaneseq
  %v712 = vshrl.u32 %v711, 7
  %v713 = vsub.s32 1, %v712
  %v714 = vrot.slane %v691, %v713
  %715 = vset.pattern.permute.xlu0 1
  %716 = vperm.xlu0 %715, %v456
  %v717 = vpop.permute.xlu0 %716
  %v719 = vmul.f32 %v710, %v717
  %v720 = vmul.f32 %v714, %v717
  %v721 = vadd.f32 %v705, %v719
  %v722 = vadd.f32 %v706, %v720
  %v723 = vlaneseq
  %v724 = vshrl.u32 %v723, 7
  %v725 = vsub.s32 2, %v724
  %v726 = vrot.slane %v690, %v725
  %v727 = vlaneseq
  %v728 = vshrl.u32 %v727, 7
  %v729 = vsub.s32 2, %v728
  %v730 = vrot.slane %v691, %v729
  %731 = vset.pattern.permute.xlu0 2
  %732 = vperm.xlu0 %731, %v456
  %v733 = vpop.permute.xlu0 %732
  %v735 = vmul.f32 %v726, %v733
  %v736 = vmul.f32 %v730, %v733
  %v737 = vadd.f32 %v721, %v735
  %v738 = vadd.f32 %v722, %v736
  %v739 = vlaneseq
  %v740 = vshrl.u32 %v739, 7
  %v741 = vsub.s32 3, %v740
  %v742 = vrot.slane %v690, %v741
  %v743 = vlaneseq
  %v744 = vshrl.u32 %v743, 7
  %v745 = vsub.s32 3, %v744
  %v746 = vrot.slane %v691, %v745
  %747 = vset.pattern.permute.xlu0 3
  %748 = vperm.xlu0 %747, %v456
  %v749 = vpop.permute.xlu0 %748
  %v751 = vmul.f32 %v742, %v749
  %v752 = vmul.f32 %v746, %v749
  %v753 = vadd.f32 %v737, %v751
  %v754 = vadd.f32 %v738, %v752
  %v755 = vlaneseq
  %v756 = vshrl.u32 %v755, 7
  %v757 = vsub.s32 4, %v756
  %v758 = vrot.slane %v690, %v757
  %v759 = vlaneseq
  %v760 = vshrl.u32 %v759, 7
  %v761 = vsub.s32 4, %v760
  %v762 = vrot.slane %v691, %v761
  %v763 = vmul.f32 %v758, %v703
  %v764 = vmul.f32 %v762, %v703
  %v765 = vlaneseq
  %v766 = vshrl.u32 %v765, 7
  %v767 = vsub.s32 5, %v766
  %v768 = vrot.slane %v690, %v767
  %v769 = vlaneseq
  %v770 = vshrl.u32 %v769, 7
  %v771 = vsub.s32 5, %v770
  %v772 = vrot.slane %v691, %v771
  %v773 = vmul.f32 %v768, %v717
  %v774 = vmul.f32 %v772, %v717
  %v775 = vadd.f32 %v763, %v773
  %v776 = vadd.f32 %v764, %v774
  %v777 = vlaneseq
  %v778 = vshrl.u32 %v777, 7
  %v779 = vsub.s32 6, %v778
  %v780 = vrot.slane %v690, %v779
  %v781 = vlaneseq
  %v782 = vshrl.u32 %v781, 7
  %v783 = vsub.s32 6, %v782
  %v784 = vrot.slane %v691, %v783
  %v785 = vmul.f32 %v780, %v733
  %v786 = vmul.f32 %v784, %v733
  %v787 = vadd.f32 %v775, %v785
  %v788 = vadd.f32 %v776, %v786
  %v789 = vlaneseq
  %v790 = vshrl.u32 %v789, 7
  %v791 = vsub.s32 7, %v790
  %v792 = vrot.slane %v690, %v791
  %v793 = vlaneseq
  %v794 = vshrl.u32 %v793, 7
  %v795 = vsub.s32 7, %v794
  %v796 = vrot.slane %v691, %v795
  %v797 = vmul.f32 %v792, %v749
  %v798 = vmul.f32 %v796, %v749
  %v799 = vadd.f32 %v787, %v797
  %v800 = vadd.f32 %v788, %v798
  %v801 = vld [vmem:[%s9] sm:$0xff]
  %v802 = vld [vmem:[%s10] sm:$0xff]
  %v803 = vadd.f32 %v753, %v754
  %804 = vadd.xlane.f32.xlu0 %v803
  %v805 = vpop.xlane.xlu0 %804
  %v806 = vadd.f32 %v799, %v800
  %807 = vadd.xlane.f32.xlu0 %v806
  %v808 = vpop.xlane.xlu0 %807
  %v809 = vmul.f32 %v753, %v753
  %v810 = vmul.f32 %v754, %v754
  %v811 = vmul.f32 %v799, %v799
  %v812 = vmul.f32 %v800, %v800
  %v813 = vadd.f32 %v809, %v810
  %814 = vadd.xlane.f32.xlu0 %v813
  %v815 = vpop.xlane.xlu0 %814
  %v816 = vadd.f32 %v811, %v812
  %817 = vadd.xlane.f32.xlu0 %v816
  %v818 = vpop.xlane.xlu0 %817
  %v819 = vadd.f32 %v805, %v808
  %v820 = vadd.f32 %v815, %v818
  %v821 = vmul.f32 %v819, 0.001953125
  %v822 = vmul.f32 %v820, 0.001953125
  %v823 = vmul.f32 %v821, %v821
  %v824 = vsub.f32 %v822, %v823
  %v825 = vmax.f32 %v824, 0.0
  %v826 = vadd.f32 %v825, 1e-05
  %v827 = vrsqrt.pop %v826
  %v828 = vmul.f32 %v801, %v827
  %v829 = vmul.f32 %v821, %v828
  %v830 = vsub.f32 %v802, %v829
  %832 = vset.pattern.permute.xlu0 0
  %833 = vperm.xlu0 %832, %v828
  %v834 = vpop.permute.xlu0 %833
  %v836 = vmul.f32 %v753, %v834
  %v837 = vmul.f32 %v754, %v834
  %v838 = vmul.f32 %v799, %v834
  %v839 = vmul.f32 %v800, %v834
  %841 = vset.pattern.permute.xlu0 0
  %842 = vperm.xlu0 %841, %v830
  %v843 = vpop.permute.xlu0 %842
  %v845 = vadd.f32 %v836, %v843
  %v846 = vadd.f32 %v837, %v843
  %v847 = vadd.f32 %v838, %v843
  %v848 = vadd.f32 %v839, %v843
  %849 = vst [vmem:[%s11] sm:$0xff] %v845
  %850 = vst [vmem:[%s11 + $0x8] sm:$0xff] %v846
  %851 = vst [vmem:[%s11 + $0x10] sm:$0xff] %v847
  %852 = vst [vmem:[%s11 + $0x18] sm:$0xff] %v848
  // Predicated region
  $region46: #{sep_conv_forward.1} parent=0 // pred_check
    _
  $region47: #{sep_conv_forward.1} parent=0 // pred_check_branch
    %854 = sbr.rel (0) target = $region49
  $region48: #{sep_conv_forward.1} parent=0 // pred_region
    _
  $region49: #{sep_conv_forward.1} parent=0 // pred_fallthru
    _
  // Predicated region
  $region50: #{sep_conv_forward.1} parent=0 // pred_check
    _
  $region51: #{sep_conv_forward.1} parent=0 // pred_check_branch
    %856 = sbr.rel (0) target = $region53
  $region52: #{sep_conv_forward.1} parent=0 // pred_region
    _
  $region53: #{sep_conv_forward.1} parent=0 // pred_fallthru
    _

</llo_original>
